<compile_context>
chip_gen: v7x
topology: tpu7x:2x2x1
jax: 0.10.0
libtpu: 0.0.40
codegen_flags: <defaults>
</compile_context>

<pallas_src>
import functools

import jax
import jax.numpy as jnp
from jax.experimental import pallas as pl
from jax.experimental.pallas import tpu as pltpu

# Layer sizes of the autoencoder (PyTorch module order).
ENC_DIMS = [28 * 28, 128, 64, 12, 3]
DEC_DIMS = [3, 12, 64, 128, 28 * 28]
ALL_DIMS = list(zip(ENC_DIMS[:-1] + DEC_DIMS[:-1], ENC_DIMS[1:] + DEC_DIMS[1:]))
N_LAYERS = len(ALL_DIMS)          # 8 original Linear layers
N_FUSED = N_LAYERS - 1            # 7 after folding Linear(12,3) o Linear(3,12)
F_IN = 28 * 28

# Fused layer dims: L3 and L4 of the original net collapse into one 12->12.
FUSED_DIMS = [ALL_DIMS[0], ALL_DIMS[1], ALL_DIMS[2],
              (12, 12), ALL_DIMS[5], ALL_DIMS[6], ALL_DIMS[7]]


def _round_up(n, m):
    return (n + m - 1) // m * m


def _ae_kernel(*refs):
    """refs = (x_ref, w1, b1, ..., w7, b7, out_ref) with the fused bottleneck.

    Fused layer stack (weights (in,out)-major bf16, biases f32):
      L0 784->128 ReLU | L1 128->64 ReLU | L2 64->12 ReLU
      L3 12->12  ReLU  (== Linear(12,3) then Linear(3,12), exact composition)
      L4 12->64  ReLU  | L5 64->128 ReLU | L6 128->784 Tanh
    """
    x_ref = refs[0]
    out_ref = refs[-1]
    param_refs = refs[1:-1]           # w1, b1, ..., w7, b7

    h = x_ref[...]                    # (block_b, 784) f32

    for layer in range(N_FUSED):
        w_ref = param_refs[2 * layer]       # (fin, fout) bf16
        b_ref = param_refs[2 * layer + 1]   # (1, fout)   f32
        # bf16 x bf16 -> f32 accumulation on the MXU.
        h = jnp.dot(h.astype(jnp.bfloat16), w_ref[...],
                    preferred_element_type=jnp.float32)
        h = h + b_ref[...]                  # broadcast over batch (f32 VPU)
        if layer == N_FUSED - 1:
            h = jnp.tanh(h)                 # decoder output: Tanh (f32 EUP)
        else:
            h = jnp.maximum(h, 0.0)         # ReLU(True)

    out_ref[...] = h.astype(out_ref.dtype)


def _prepare_params(params):
    """Fold the activation-free pair (layers 3,4) and cast weights to bf16."""
    w = [params[2 * i] for i in range(N_LAYERS)]
    b = [params[2 * i + 1] for i in range(N_LAYERS)]
    # No nonlinearity between Linear(12,3) and Linear(3,12) -> exact fold (f32).
    w_fold = w[3] @ w[4]                    # (12, 12)
    b_fold = b[3] @ w[4] + b[4]             # (1, 12)
    w_fused = [w[0], w[1], w[2], w_fold, w[5], w[6], w[7]]
    b_fused = [b[0], b[1], b[2], b_fold, b[5], b[6], b[7]]
    out = []
    for wi, bi in zip(w_fused, b_fused):
        out.append(wi.astype(jnp.bfloat16))   # MXU operands in bf16
        out.append(bi.astype(jnp.float32))    # bias stays f32
    return out


@functools.partial(jax.jit, static_argnames=("block_b",))
def autoencoder_forward(x, params, block_b=512):
    """x: (B, 784) float32. params: flat list [w1, b1, ..., w8, b8], f32,
    weights (in_features, out_features), biases (1, out_features)."""
    B, F = x.shape
    assert F == F_IN

    fused = _prepare_params(params)

    # Batch tiling: shrink the tile for small batches, otherwise pad B up to a
    # multiple of block_b (padded rows are sliced off afterwards).
    block_b = min(block_b, _round_up(B, 8))
    B_pad = _round_up(B, block_b)
    if B_pad != B:
        x = jnp.pad(x, ((0, B_pad - B), (0, 0)))

    grid = (B_pad // block_b,)

    in_specs = [pl.BlockSpec((block_b, F), lambda i: (i, 0))]
    for (fin, fout) in FUSED_DIMS:
        # Weights / biases are fully resident; same block every grid step.
        in_specs.append(pl.BlockSpec((fin, fout), lambda i: (0, 0)))
        in_specs.append(pl.BlockSpec((1, fout), lambda i: (0, 0)))

    out_spec = pl.BlockSpec((block_b, F), lambda i: (i, 0))

    out = pl.pallas_call(
        _ae_kernel,
        out_shape=jax.ShapeDtypeStruct((B_pad, F), jnp.float32),
        grid_spec=pltpu.PrefetchScalarGridSpec(
            num_scalar_prefetch=0,
            grid=grid,
            in_specs=in_specs,
            out_specs=out_spec,
        ),
        compiler_params=pltpu.CompilerParams(
            dimension_semantics=("parallel",),
            vmem_limit_bytes=48 * 1024 * 1024,
        ),
    )(x, *fused)

    return out[:B] if B_pad != B else out


def init_params(key):
    """Deterministic init mimicking PyTorch Linear default: U(+-1/sqrt(fan_in))."""
    params = []
    for (fin, fout) in ALL_DIMS:
        key, kw, kb = jax.random.split(key, 3)
        bound = 1.0 / jnp.sqrt(jnp.float32(fin))
        w = jax.random.uniform(kw, (fin, fout), jnp.float32, -bound, bound)
        b = jax.random.uniform(kb, (1, fout), jnp.float32, -bound, bound)
        params += [w, b]
    return params


def reference_forward(x, params):
    """Pure-JAX f32 reference of the original 8-layer module."""
    h = x
    for layer in range(N_LAYERS):
        w, b = params[2 * layer], params[2 * layer + 1]
        h = h @ w + b
        if layer == N_LAYERS - 1:
            h = jnp.tanh(h)
        elif layer != 3:
            h = jnp.maximum(h, 0.0)
    return h


if __name__ == "__main__":
    key = jax.random.PRNGKey(0)
    key, kx = jax.random.split(key)

    B = 13  # small batch; exercises the pad-to-tile path (13 -> 16 rows)
    x = jax.random.normal(kx, (B, 28 * 28), jnp.float32)
    params = init_params(key)

    out = autoencoder_forward(x, params)
    out = jax.block_until_ready(out)

    ref = reference_forward(x, params)
    assert out.shape == (B, 28 * 28)
    # bf16 MXU operands -> loosened tolerance vs the f32 reference.
    assert jnp.allclose(out, ref, atol=5e-2, rtol=5e-2), (
        "mismatch vs reference, max abs diff = "
        f"{float(jnp.max(jnp.abs(out - ref)))}")

    print("KERNEL_OK")
</pallas_src>

<mosaic_0001>
module attributes {stable_mosaic.version = 11 : i64} {
  func.func @_ae_kernel(%arg0: i32, %arg1: memref<16x784xf32, #tpu.memory_space<vmem>>, %arg2: memref<784x128xbf16, #tpu.memory_space<vmem>>, %arg3: memref<1x128xf32, #tpu.memory_space<vmem>>, %arg4: memref<128x64xbf16, #tpu.memory_space<vmem>>, %arg5: memref<1x64xf32, #tpu.memory_space<vmem>>, %arg6: memref<64x12xbf16, #tpu.memory_space<vmem>>, %arg7: memref<1x12xf32, #tpu.memory_space<vmem>>, %arg8: memref<12x12xbf16, #tpu.memory_space<vmem>>, %arg9: memref<1x12xf32, #tpu.memory_space<vmem>>, %arg10: memref<12x64xbf16, #tpu.memory_space<vmem>>, %arg11: memref<1x64xf32, #tpu.memory_space<vmem>>, %arg12: memref<64x128xbf16, #tpu.memory_space<vmem>>, %arg13: memref<1x128xf32, #tpu.memory_space<vmem>>, %arg14: memref<128x784xbf16, #tpu.memory_space<vmem>>, %arg15: memref<1x784xf32, #tpu.memory_space<vmem>>, %arg16: memref<16x784xf32, #tpu.memory_space<vmem>>) attributes {dimension_semantics = [#tpu.dimension_semantics<parallel>], iteration_bounds = array<i64: 1>, scalar_prefetch = 0 : i64, scratch_operands = 0 : i64, tpu.core_type = #tpu.core_type<tc>, window_params = [{transform_indices = @transform_0, window_bounds = array<i64: 16, 784>}, {pipeline_mode = #tpu.pipeline_mode<synchronous>, transform_indices = @transform_1, window_bounds = array<i64: 784, 128>}, {pipeline_mode = #tpu.pipeline_mode<synchronous>, transform_indices = @transform_2, window_bounds = array<i64: 1, 128>}, {pipeline_mode = #tpu.pipeline_mode<synchronous>, transform_indices = @transform_3, window_bounds = array<i64: 128, 64>}, {pipeline_mode = #tpu.pipeline_mode<synchronous>, transform_indices = @transform_4, window_bounds = array<i64: 1, 64>}, {pipeline_mode = #tpu.pipeline_mode<synchronous>, transform_indices = @transform_5, window_bounds = array<i64: 64, 12>}, {pipeline_mode = #tpu.pipeline_mode<synchronous>, transform_indices = @transform_6, window_bounds = array<i64: 1, 12>}, {pipeline_mode = #tpu.pipeline_mode<synchronous>, transform_indices = @transform_7, window_bounds = array<i64: 12, 12>}, {pipeline_mode = #tpu.pipeline_mode<synchronous>, transform_indices = @transform_8, window_bounds = array<i64: 1, 12>}, {pipeline_mode = #tpu.pipeline_mode<synchronous>, transform_indices = @transform_9, window_bounds = array<i64: 12, 64>}, {pipeline_mode = #tpu.pipeline_mode<synchronous>, transform_indices = @transform_10, window_bounds = array<i64: 1, 64>}, {pipeline_mode = #tpu.pipeline_mode<synchronous>, transform_indices = @transform_11, window_bounds = array<i64: 64, 128>}, {pipeline_mode = #tpu.pipeline_mode<synchronous>, transform_indices = @transform_12, window_bounds = array<i64: 1, 128>}, {pipeline_mode = #tpu.pipeline_mode<synchronous>, transform_indices = @transform_13, window_bounds = array<i64: 128, 784>}, {pipeline_mode = #tpu.pipeline_mode<synchronous>, transform_indices = @transform_14, window_bounds = array<i64: 1, 784>}, {transform_indices = @transform_15, window_bounds = array<i64: 16, 784>}]} {
    %c0 = arith.constant 0 : index
    %c0_0 = arith.constant 0 : index
    %0 = vector.load %arg1[%c0, %c0_0] : memref<16x784xf32, #tpu.memory_space<vmem>>, vector<16x784xf32>
    %1 = arith.truncf %0 : vector<16x784xf32> to vector<16x784xbf16>
    %c0_1 = arith.constant 0 : index
    %c0_2 = arith.constant 0 : index
    %2 = vector.load %arg2[%c0_1, %c0_2] : memref<784x128xbf16, #tpu.memory_space<vmem>>, vector<784x128xbf16>
    %cst = arith.constant dense<0.000000e+00> : vector<16x128xf32>
    %3 = tpu.matmul %1, %2, %cst {dimension_numbers = #tpu.dot_dimension_numbers<[1], [0], [0], [1], [0, 0, 1, 1], [], []>} : vector<16x784xbf16>, vector<784x128xbf16>, vector<16x128xf32> -> vector<16x128xf32>
    %c0_3 = arith.constant 0 : index
    %c0_4 = arith.constant 0 : index
    %4 = vector.load %arg3[%c0_3, %c0_4] : memref<1x128xf32, #tpu.memory_space<vmem>>, vector<1x128xf32>
    %5 = vector.broadcast %4 : vector<1x128xf32> to vector<16x128xf32>
    %6 = arith.addf %3, %5 : vector<16x128xf32>
    %cst_5 = arith.constant 0.000000e+00 : f32
    %7 = vector.broadcast %cst_5 : f32 to vector<16x128xf32>
    %8 = arith.maximumf %6, %7 : vector<16x128xf32>
    %9 = arith.truncf %8 : vector<16x128xf32> to vector<16x128xbf16>
    %c0_6 = arith.constant 0 : index
    %c0_7 = arith.constant 0 : index
    %10 = vector.load %arg4[%c0_6, %c0_7] : memref<128x64xbf16, #tpu.memory_space<vmem>>, vector<128x64xbf16>
    %cst_8 = arith.constant dense<0.000000e+00> : vector<16x64xf32>
    %11 = tpu.matmul %9, %10, %cst_8 {dimension_numbers = #tpu.dot_dimension_numbers<[1], [0], [0], [1], [0, 0, 1, 1], [], []>} : vector<16x128xbf16>, vector<128x64xbf16>, vector<16x64xf32> -> vector<16x64xf32>
    %c0_9 = arith.constant 0 : index
    %c0_10 = arith.constant 0 : index
    %12 = vector.load %arg5[%c0_9, %c0_10] : memref<1x64xf32, #tpu.memory_space<vmem>>, vector<1x64xf32>
    %13 = vector.broadcast %12 : vector<1x64xf32> to vector<16x64xf32>
    %14 = arith.addf %11, %13 : vector<16x64xf32>
    %cst_11 = arith.constant 0.000000e+00 : f32
    %15 = vector.broadcast %cst_11 : f32 to vector<16x64xf32>
    %16 = arith.maximumf %14, %15 : vector<16x64xf32>
    %17 = arith.truncf %16 : vector<16x64xf32> to vector<16x64xbf16>
    %c0_12 = arith.constant 0 : index
    %c0_13 = arith.constant 0 : index
    %18 = vector.load %arg6[%c0_12, %c0_13] : memref<64x12xbf16, #tpu.memory_space<vmem>>, vector<64x12xbf16>
    %cst_14 = arith.constant dense<0.000000e+00> : vector<16x12xf32>
    %19 = tpu.matmul %17, %18, %cst_14 {dimension_numbers = #tpu.dot_dimension_numbers<[1], [0], [0], [1], [0, 0, 1, 1], [], []>} : vector<16x64xbf16>, vector<64x12xbf16>, vector<16x12xf32> -> vector<16x12xf32>
    %c0_15 = arith.constant 0 : index
    %c0_16 = arith.constant 0 : index
    %20 = vector.load %arg7[%c0_15, %c0_16] : memref<1x12xf32, #tpu.memory_space<vmem>>, vector<1x12xf32>
    %21 = vector.broadcast %20 : vector<1x12xf32> to vector<16x12xf32>
    %22 = arith.addf %19, %21 : vector<16x12xf32>
    %cst_17 = arith.constant 0.000000e+00 : f32
    %23 = vector.broadcast %cst_17 : f32 to vector<16x12xf32>
    %24 = arith.maximumf %22, %23 : vector<16x12xf32>
    %25 = arith.truncf %24 : vector<16x12xf32> to vector<16x12xbf16>
    %c0_18 = arith.constant 0 : index
    %c0_19 = arith.constant 0 : index
    %26 = vector.load %arg8[%c0_18, %c0_19] : memref<12x12xbf16, #tpu.memory_space<vmem>>, vector<12x12xbf16>
    %cst_20 = arith.constant dense<0.000000e+00> : vector<16x12xf32>
    %27 = tpu.matmul %25, %26, %cst_20 {dimension_numbers = #tpu.dot_dimension_numbers<[1], [0], [0], [1], [0, 0, 1, 1], [], []>} : vector<16x12xbf16>, vector<12x12xbf16>, vector<16x12xf32> -> vector<16x12xf32>
    %c0_21 = arith.constant 0 : index
    %c0_22 = arith.constant 0 : index
    %28 = vector.load %arg9[%c0_21, %c0_22] : memref<1x12xf32, #tpu.memory_space<vmem>>, vector<1x12xf32>
    %29 = vector.broadcast %28 : vector<1x12xf32> to vector<16x12xf32>
    %30 = arith.addf %27, %29 : vector<16x12xf32>
    %cst_23 = arith.constant 0.000000e+00 : f32
    %31 = vector.broadcast %cst_23 : f32 to vector<16x12xf32>
    %32 = arith.maximumf %30, %31 : vector<16x12xf32>
    %33 = arith.truncf %32 : vector<16x12xf32> to vector<16x12xbf16>
    %c0_24 = arith.constant 0 : index
    %c0_25 = arith.constant 0 : index
    %34 = vector.load %arg10[%c0_24, %c0_25] : memref<12x64xbf16, #tpu.memory_space<vmem>>, vector<12x64xbf16>
    %cst_26 = arith.constant dense<0.000000e+00> : vector<16x64xf32>
    %35 = tpu.matmul %33, %34, %cst_26 {dimension_numbers = #tpu.dot_dimension_numbers<[1], [0], [0], [1], [0, 0, 1, 1], [], []>} : vector<16x12xbf16>, vector<12x64xbf16>, vector<16x64xf32> -> vector<16x64xf32>
    %c0_27 = arith.constant 0 : index
    %c0_28 = arith.constant 0 : index
    %36 = vector.load %arg11[%c0_27, %c0_28] : memref<1x64xf32, #tpu.memory_space<vmem>>, vector<1x64xf32>
    %37 = vector.broadcast %36 : vector<1x64xf32> to vector<16x64xf32>
    %38 = arith.addf %35, %37 : vector<16x64xf32>
    %cst_29 = arith.constant 0.000000e+00 : f32
    %39 = vector.broadcast %cst_29 : f32 to vector<16x64xf32>
    %40 = arith.maximumf %38, %39 : vector<16x64xf32>
    %41 = arith.truncf %40 : vector<16x64xf32> to vector<16x64xbf16>
    %c0_30 = arith.constant 0 : index
    %c0_31 = arith.constant 0 : index
    %42 = vector.load %arg12[%c0_30, %c0_31] : memref<64x128xbf16, #tpu.memory_space<vmem>>, vector<64x128xbf16>
    %cst_32 = arith.constant dense<0.000000e+00> : vector<16x128xf32>
    %43 = tpu.matmul %41, %42, %cst_32 {dimension_numbers = #tpu.dot_dimension_numbers<[1], [0], [0], [1], [0, 0, 1, 1], [], []>} : vector<16x64xbf16>, vector<64x128xbf16>, vector<16x128xf32> -> vector<16x128xf32>
    %c0_33 = arith.constant 0 : index
    %c0_34 = arith.constant 0 : index
    %44 = vector.load %arg13[%c0_33, %c0_34] : memref<1x128xf32, #tpu.memory_space<vmem>>, vector<1x128xf32>
    %45 = vector.broadcast %44 : vector<1x128xf32> to vector<16x128xf32>
    %46 = arith.addf %43, %45 : vector<16x128xf32>
    %cst_35 = arith.constant 0.000000e+00 : f32
    %47 = vector.broadcast %cst_35 : f32 to vector<16x128xf32>
    %48 = arith.maximumf %46, %47 : vector<16x128xf32>
    %49 = arith.truncf %48 : vector<16x128xf32> to vector<16x128xbf16>
    %c0_36 = arith.constant 0 : index
    %c0_37 = arith.constant 0 : index
    %50 = vector.load %arg14[%c0_36, %c0_37] : memref<128x784xbf16, #tpu.memory_space<vmem>>, vector<128x784xbf16>
    %cst_38 = arith.constant dense<0.000000e+00> : vector<16x784xf32>
    %51 = tpu.matmul %49, %50, %cst_38 {dimension_numbers = #tpu.dot_dimension_numbers<[1], [0], [0], [1], [0, 0, 1, 1], [], []>} : vector<16x128xbf16>, vector<128x784xbf16>, vector<16x784xf32> -> vector<16x784xf32>
    %c0_39 = arith.constant 0 : index
    %c0_40 = arith.constant 0 : index
    %52 = vector.load %arg15[%c0_39, %c0_40] : memref<1x784xf32, #tpu.memory_space<vmem>>, vector<1x784xf32>
    %53 = vector.broadcast %52 : vector<1x784xf32> to vector<16x784xf32>
    %54 = arith.addf %51, %53 : vector<16x784xf32>
    %55 = math.tanh %54 : vector<16x784xf32>
    %c0_41 = arith.constant 0 : index
    %c0_42 = arith.constant 0 : index
    %56 = vector.load %arg16[%c0_41, %c0_42] : memref<16x784xf32, #tpu.memory_space<vmem>>, vector<16x784xf32>
    tpu.vector_store %arg16[%c0_41, %c0_42], %55 {strides = array<i32>} : memref<16x784xf32, #tpu.memory_space<vmem>>, vector<16x784xf32>,
    return
  }
  func.func @transform_0(%arg0: i32) -> (i32, i32) {
    %c0_i32 = arith.constant 0 : i32
    %c0_i32_0 = arith.constant 0 : i32
    return %arg0, %c0_i32 : i32, i32
  }
  func.func @transform_1(%arg0: i32) -> (i32, i32) {
    %c0_i32 = arith.constant 0 : i32
    %c0_i32_0 = arith.constant 0 : i32
    %c0_i32_1 = arith.constant 0 : i32
    return %c0_i32, %c0_i32_0 : i32, i32
  }
  func.func @transform_2(%arg0: i32) -> (i32, i32) {
    %c0_i32 = arith.constant 0 : i32
    %c0_i32_0 = arith.constant 0 : i32
    %c0_i32_1 = arith.constant 0 : i32
    return %c0_i32, %c0_i32_0 : i32, i32
  }
  func.func @transform_3(%arg0: i32) -> (i32, i32) {
    %c0_i32 = arith.constant 0 : i32
    %c0_i32_0 = arith.constant 0 : i32
    %c0_i32_1 = arith.constant 0 : i32
    return %c0_i32, %c0_i32_0 : i32, i32
  }
  func.func @transform_4(%arg0: i32) -> (i32, i32) {
    %c0_i32 = arith.constant 0 : i32
    %c0_i32_0 = arith.constant 0 : i32
    %c0_i32_1 = arith.constant 0 : i32
    return %c0_i32, %c0_i32_0 : i32, i32
  }
  func.func @transform_5(%arg0: i32) -> (i32, i32) {
    %c0_i32 = arith.constant 0 : i32
    %c0_i32_0 = arith.constant 0 : i32
    %c0_i32_1 = arith.constant 0 : i32
    return %c0_i32, %c0_i32_0 : i32, i32
  }
  func.func @transform_6(%arg0: i32) -> (i32, i32) {
    %c0_i32 = arith.constant 0 : i32
    %c0_i32_0 = arith.constant 0 : i32
    %c0_i32_1 = arith.constant 0 : i32
    return %c0_i32, %c0_i32_0 : i32, i32
  }
  func.func @transform_7(%arg0: i32) -> (i32, i32) {
    %c0_i32 = arith.constant 0 : i32
    %c0_i32_0 = arith.constant 0 : i32
    %c0_i32_1 = arith.constant 0 : i32
    return %c0_i32, %c0_i32_0 : i32, i32
  }
  func.func @transform_8(%arg0: i32) -> (i32, i32) {
    %c0_i32 = arith.constant 0 : i32
    %c0_i32_0 = arith.constant 0 : i32
    %c0_i32_1 = arith.constant 0 : i32
    return %c0_i32, %c0_i32_0 : i32, i32
  }
  func.func @transform_9(%arg0: i32) -> (i32, i32) {
    %c0_i32 = arith.constant 0 : i32
    %c0_i32_0 = arith.constant 0 : i32
    %c0_i32_1 = arith.constant 0 : i32
    return %c0_i32, %c0_i32_0 : i32, i32
  }
  func.func @transform_10(%arg0: i32) -> (i32, i32) {
    %c0_i32 = arith.constant 0 : i32
    %c0_i32_0 = arith.constant 0 : i32
    %c0_i32_1 = arith.constant 0 : i32
    return %c0_i32, %c0_i32_0 : i32, i32
  }
  func.func @transform_11(%arg0: i32) -> (i32, i32) {
    %c0_i32 = arith.constant 0 : i32
    %c0_i32_0 = arith.constant 0 : i32
    %c0_i32_1 = arith.constant 0 : i32
    return %c0_i32, %c0_i32_0 : i32, i32
  }
  func.func @transform_12(%arg0: i32) -> (i32, i32) {
    %c0_i32 = arith.constant 0 : i32
    %c0_i32_0 = arith.constant 0 : i32
    %c0_i32_1 = arith.constant 0 : i32
    return %c0_i32, %c0_i32_0 : i32, i32
  }
  func.func @transform_13(%arg0: i32) -> (i32, i32) {
    %c0_i32 = arith.constant 0 : i32
    %c0_i32_0 = arith.constant 0 : i32
    %c0_i32_1 = arith.constant 0 : i32
    return %c0_i32, %c0_i32_0 : i32, i32
  }
  func.func @transform_14(%arg0: i32) -> (i32, i32) {
    %c0_i32 = arith.constant 0 : i32
    %c0_i32_0 = arith.constant 0 : i32
    %c0_i32_1 = arith.constant 0 : i32
    return %c0_i32, %c0_i32_0 : i32, i32
  }
  func.func @transform_15(%arg0: i32) -> (i32, i32) {
    %c0_i32 = arith.constant 0 : i32
    %c0_i32_0 = arith.constant 0 : i32
    return %arg0, %c0_i32 : i32, i32
  }
}

</mosaic_0001>

<llo_original>
// kernel: autoencoder_forward.1
$region0: #{autoencoder_forward.1}
  #allocation0 [shape = 'u32[]', space=smem, size = 0x4, offset = 0x4, fixed_abs, tag = 'smem constant byte address 0x4 - core index']
  #allocation1 [shape = 'u32[144,128]{1,0:T(1,128)}', space=vmem, size = 0x12000, scoped, tag = 'internal scratch']
  %s0 = inlined_call_operand.vmem [shape: f32[16,784], index: 0, kind: input, shape index: {}]
  %s1 = inlined_call_operand.vmem [shape: bf16[784,128], index: 1, kind: input, shape index: {}]
  %s2 = inlined_call_operand.vmem [shape: f32[1,128], index: 2, kind: input, shape index: {}]
  %s3 = inlined_call_operand.vmem [shape: bf16[128,64], index: 3, kind: input, shape index: {}]
  %s4 = inlined_call_operand.vmem [shape: f32[1,64], index: 4, kind: input, shape index: {}]
  %s5 = inlined_call_operand.vmem [shape: bf16[64,12], index: 5, kind: input, shape index: {}]
  %s6 = inlined_call_operand.vmem [shape: f32[1,12], index: 6, kind: input, shape index: {}]
  %s7 = inlined_call_operand.vmem [shape: bf16[12,12], index: 7, kind: input, shape index: {}]
  %s8 = inlined_call_operand.vmem [shape: f32[1,12], index: 8, kind: input, shape index: {}]
  %s9 = inlined_call_operand.vmem [shape: bf16[12,64], index: 9, kind: input, shape index: {}]
  %s10 = inlined_call_operand.vmem [shape: f32[1,64], index: 10, kind: input, shape index: {}]
  %s11 = inlined_call_operand.vmem [shape: bf16[64,128], index: 11, kind: input, shape index: {}]
  %s12 = inlined_call_operand.vmem [shape: f32[1,128], index: 12, kind: input, shape index: {}]
  %s13 = inlined_call_operand.vmem [shape: bf16[128,784], index: 13, kind: input, shape index: {}]
  %s14 = inlined_call_operand.vmem [shape: f32[1,784], index: 14, kind: input, shape index: {}]
  %s15 = inlined_call_operand.hbm [shape: f32[16,784], index: 15, kind: output, shape index: {}]
  %s16 = sld [smem:[#allocation0]]
  $region70: #{autoencoder_forward.1} parent=0
    _
  %s18 = ssub.s32 1, %s16
  %s19 = scalar_select 0, %s18, %s16
  $region1: #{autoencoder_forward.1} parent=0
    #allocation2 [shape = 'u8[57344]{0}', space=vmem, size = 0xe000, scoped, tag = 'output window, operand 0, single buffered']
    #allocation3 [shape = 's32[1]{0}', space=sflag, size = 0x4, scoped, tag = 'scoped memory for autoencoder_forward.1']
    %20 = vsyncpa [#allocation3], 0
    // Predicated region
    $region2: #{autoencoder_forward.1} parent=1 // pred_check
      _
    $region3: #{autoencoder_forward.1} parent=1 // pred_check_branch
      %22 = sbr.rel (0) target = $region5
    $region4: #{autoencoder_forward.1} parent=1 // pred_region
      _
    $region5: #{autoencoder_forward.1} parent=1 // pred_fallthru
      _
    // Predicated region
    $region6: #{autoencoder_forward.1} parent=1 // pred_check
      _
    $region7: #{autoencoder_forward.1} parent=1 // pred_check_branch
      %24 = sbr.rel (0) target = $region9
    $region8: #{autoencoder_forward.1} parent=1 // pred_region
      _
    $region9: #{autoencoder_forward.1} parent=1 // pred_fallthru
      _
    // Predicated region
    $region10: #{autoencoder_forward.1} parent=1 // pred_check
      _
    $region11: #{autoencoder_forward.1} parent=1 // pred_check_branch
      %26 = sbr.rel (0) target = $region13
    $region12: #{autoencoder_forward.1} parent=1 // pred_region
      _
    $region13: #{autoencoder_forward.1} parent=1 // pred_fallthru
      _
    // Predicated region
    $region14: #{autoencoder_forward.1} parent=1 // pred_check
      _
    $region15: #{autoencoder_forward.1} parent=1 // pred_check_branch
      %28 = sbr.rel (0) target = $region17
    $region16: #{autoencoder_forward.1} parent=1 // pred_region
      _
    $region17: #{autoencoder_forward.1} parent=1 // pred_fallthru
      _
    // Predicated region
    $region18: #{autoencoder_forward.1} parent=1 // pred_check
      _
    $region19: #{autoencoder_forward.1} parent=1 // pred_check_branch
      %30 = sbr.rel (0) target = $region21
    $region20: #{autoencoder_forward.1} parent=1 // pred_region
      _
    $region21: #{autoencoder_forward.1} parent=1 // pred_fallthru
      _
    // Predicated region
    $region22: #{autoencoder_forward.1} parent=1 // pred_check
      _
    $region23: #{autoencoder_forward.1} parent=1 // pred_check_branch
      %32 = sbr.rel (0) target = $region25
    $region24: #{autoencoder_forward.1} parent=1 // pred_region
      _
    $region25: #{autoencoder_forward.1} parent=1 // pred_fallthru
      _
    // Predicated region
    $region26: #{autoencoder_forward.1} parent=1 // pred_check
      _
    $region27: #{autoencoder_forward.1} parent=1 // pred_check_branch
      %34 = sbr.rel (0) target = $region29
    $region28: #{autoencoder_forward.1} parent=1 // pred_region
      _
    $region29: #{autoencoder_forward.1} parent=1 // pred_fallthru
      _
    // Predicated region
    $region30: #{autoencoder_forward.1} parent=1 // pred_check
      _
    $region31: #{autoencoder_forward.1} parent=1 // pred_check_branch
      %36 = sbr.rel (0) target = $region33
    $region32: #{autoencoder_forward.1} parent=1 // pred_region
      _
    $region33: #{autoencoder_forward.1} parent=1 // pred_fallthru
      _
    // Predicated region
    $region34: #{autoencoder_forward.1} parent=1 // pred_check
      _
    $region35: #{autoencoder_forward.1} parent=1 // pred_check_branch
      %38 = sbr.rel (0) target = $region37
    $region36: #{autoencoder_forward.1} parent=1 // pred_region
      _
    $region37: #{autoencoder_forward.1} parent=1 // pred_fallthru
      _
    // Predicated region
    $region38: #{autoencoder_forward.1} parent=1 // pred_check
      _
    $region39: #{autoencoder_forward.1} parent=1 // pred_check_branch
      %40 = sbr.rel (0) target = $region41
    $region40: #{autoencoder_forward.1} parent=1 // pred_region
      _
    $region41: #{autoencoder_forward.1} parent=1 // pred_fallthru
      _
    // Predicated region
    $region42: #{autoencoder_forward.1} parent=1 // pred_check
      _
    $region43: #{autoencoder_forward.1} parent=1 // pred_check_branch
      %42 = sbr.rel (0) target = $region45
    $region44: #{autoencoder_forward.1} parent=1 // pred_region
      _
    $region45: #{autoencoder_forward.1} parent=1 // pred_fallthru
      _
    // Predicated region
    $region46: #{autoencoder_forward.1} parent=1 // pred_check
      _
    $region47: #{autoencoder_forward.1} parent=1 // pred_check_branch
      %44 = sbr.rel (0) target = $region49
    $region48: #{autoencoder_forward.1} parent=1 // pred_region
      _
    $region49: #{autoencoder_forward.1} parent=1 // pred_fallthru
      _
    // Predicated region
    $region50: #{autoencoder_forward.1} parent=1 // pred_check
      _
    $region51: #{autoencoder_forward.1} parent=1 // pred_check_branch
      %46 = sbr.rel (0) target = $region53
    $region52: #{autoencoder_forward.1} parent=1 // pred_region
      _
    $region53: #{autoencoder_forward.1} parent=1 // pred_fallthru
      _
    // Predicated region
    $region54: #{autoencoder_forward.1} parent=1 // pred_check
      _
    $region55: #{autoencoder_forward.1} parent=1 // pred_check_branch
      %48 = sbr.rel (0) target = $region57
    $region56: #{autoencoder_forward.1} parent=1 // pred_region
      _
    $region57: #{autoencoder_forward.1} parent=1 // pred_fallthru
      _
    // Predicated region
    $region58: #{autoencoder_forward.1} parent=1 // pred_check
      _
    $region59: #{autoencoder_forward.1} parent=1 // pred_check_branch
      %50 = sbr.rel (0) target = $region61
    $region60: #{autoencoder_forward.1} parent=1 // pred_region
      _
    $region61: #{autoencoder_forward.1} parent=1 // pred_fallthru
      _
    %v52 = vld [vmem:[%s0] sm:$0xff]
    %v53 = vld [vmem:[%s0 + $0x8] sm:$0xff]
    %v54 = vld [vmem:[%s0 + $0x10] sm:$0xff]
    %v55 = vld [vmem:[%s0 + $0x18] sm:$0xff]
    %v56 = vld [vmem:[%s0 + $0x20] sm:$0xff]
    %v57 = vld [vmem:[%s0 + $0x28] sm:$0xff]
    %v58 = vld [vmem:[%s0 + $0x30] sm:$0xff]
    %v59 = vld [vmem:[%s0 + $0x38] sm:$0xff]
    %v60 = vld [vmem:[%s0 + $0x40] sm:$0xff]
    %v61 = vld [vmem:[%s0 + $0x48] sm:$0xff]
    %v62 = vld [vmem:[%s0 + $0x50] sm:$0xff]
    %v63 = vld [vmem:[%s0 + $0x58] sm:$0xff]
    %v64 = vld [vmem:[%s0 + $0x60] sm:$0xff]
    %v65 = vld [vmem:[%s0 + $0x68] sm:$0xff]
    %v66 = vpack.c.bf16 %v59, %v52
    %v67 = vpack.c.bf16 %v60, %v53
    %v68 = vpack.c.bf16 %v61, %v54
    %v69 = vpack.c.bf16 %v62, %v55
    %v70 = vpack.c.bf16 %v63, %v56
    %v71 = vpack.c.bf16 %v64, %v57
    %v72 = vpack.c.bf16 %v65, %v58
    %v73 = vld [vmem:[%s1] sm:$0xf]
    %v74 = vld [vmem:[%s1 + $0x4] sm:$0xf]
    %v75 = vld [vmem:[%s1 + $0x8] sm:$0xf]
    %v76 = vld [vmem:[%s1 + $0xc] sm:$0xf]
    %v77 = vld [vmem:[%s1 + $0x10] sm:$0xf]
    %v78 = vld [vmem:[%s1 + $0x14] sm:$0xf]
    %v79 = vld [vmem:[%s1 + $0x18] sm:$0xf]
    %v80 = vld [vmem:[%s1 + $0x1c] sm:$0xf]
    %v81 = vld [vmem:[%s1 + $0x20] sm:$0xf]
    %v82 = vld [vmem:[%s1 + $0x24] sm:$0xf]
    %v83 = vld [vmem:[%s1 + $0x28] sm:$0xf]
    %v84 = vld [vmem:[%s1 + $0x2c] sm:$0xf]
    %v85 = vld [vmem:[%s1 + $0x30] sm:$0xf]
    %v86 = vld [vmem:[%s1 + $0x34] sm:$0xf]
    %v87 = vld [vmem:[%s1 + $0x38] sm:$0xf]
    %v88 = vld [vmem:[%s1 + $0x3c] sm:$0xf]
    %v89 = vld [vmem:[%s1 + $0x40] sm:$0xf]
    %v90 = vld [vmem:[%s1 + $0x44] sm:$0xf]
    %v91 = vld [vmem:[%s1 + $0x48] sm:$0xf]
    %v92 = vld [vmem:[%s1 + $0x4c] sm:$0xf]
    %v93 = vld [vmem:[%s1 + $0x50] sm:$0xf]
    %v94 = vld [vmem:[%s1 + $0x54] sm:$0xf]
    %v95 = vld [vmem:[%s1 + $0x58] sm:$0xf]
    %v96 = vld [vmem:[%s1 + $0x5c] sm:$0xf]
    %v97 = vld [vmem:[%s1 + $0x60] sm:$0xf]
    %v98 = vld [vmem:[%s1 + $0x64] sm:$0xf]
    %v99 = vld [vmem:[%s1 + $0x68] sm:$0xf]
    %v100 = vld [vmem:[%s1 + $0x6c] sm:$0xf]
    %v101 = vld [vmem:[%s1 + $0x70] sm:$0xf]
    %v102 = vld [vmem:[%s1 + $0x74] sm:$0xf]
    %v103 = vld [vmem:[%s1 + $0x78] sm:$0xf]
    %v104 = vld [vmem:[%s1 + $0x7c] sm:$0xf]
    %v105 = vld [vmem:[%s1 + $0x80] sm:$0xf]
    %v106 = vld [vmem:[%s1 + $0x84] sm:$0xf]
    %v107 = vld [vmem:[%s1 + $0x88] sm:$0xf]
    %v108 = vld [vmem:[%s1 + $0x8c] sm:$0xf]
    %v109 = vld [vmem:[%s1 + $0x90] sm:$0xf]
    %v110 = vld [vmem:[%s1 + $0x94] sm:$0xf]
    %v111 = vld [vmem:[%s1 + $0x98] sm:$0xf]
    %v112 = vld [vmem:[%s1 + $0x9c] sm:$0xf]
    %v113 = vld [vmem:[%s1 + $0xa0] sm:$0xf]
    %v114 = vld [vmem:[%s1 + $0xa4] sm:$0xf]
    %v115 = vld [vmem:[%s1 + $0xa8] sm:$0xf]
    %v116 = vld [vmem:[%s1 + $0xac] sm:$0xf]
    %v117 = vld [vmem:[%s1 + $0xb0] sm:$0xf]
    %v118 = vld [vmem:[%s1 + $0xb4] sm:$0xf]
    %v119 = vld [vmem:[%s1 + $0xb8] sm:$0xf]
    %v120 = vld [vmem:[%s1 + $0xbc] sm:$0xf]
    %v121 = vld [vmem:[%s1 + $0xc0] sm:$0xf]
    %v122 = vld [vmem:[%s1 + $0xc4] sm:$0xf]
    %v123 = vld [vmem:[%s1 + $0xc8] sm:$0xf]
    %v124 = vld [vmem:[%s1 + $0xcc] sm:$0xf]
    %v125 = vld [vmem:[%s1 + $0xd0] sm:$0xf]
    %v126 = vld [vmem:[%s1 + $0xd4] sm:$0xf]
    %v127 = vld [vmem:[%s1 + $0xd8] sm:$0xf]
    %v128 = vld [vmem:[%s1 + $0xdc] sm:$0xf]
    %v129 = vld [vmem:[%s1 + $0xe0] sm:$0xf]
    %v130 = vld [vmem:[%s1 + $0xe4] sm:$0xf]
    %v131 = vld [vmem:[%s1 + $0xe8] sm:$0xf]
    %v132 = vld [vmem:[%s1 + $0xec] sm:$0xf]
    %v133 = vld [vmem:[%s1 + $0xf0] sm:$0xf]
    %v134 = vld [vmem:[%s1 + $0xf4] sm:$0xf]
    %v135 = vld [vmem:[%s1 + $0xf8] sm:$0xf]
    %v136 = vld [vmem:[%s1 + $0xfc] sm:$0xf]
    %v137 = vld [vmem:[%s1 + $0x100] sm:$0xf]
    %v138 = vld [vmem:[%s1 + $0x104] sm:$0xf]
    %v139 = vld [vmem:[%s1 + $0x108] sm:$0xf]
    %v140 = vld [vmem:[%s1 + $0x10c] sm:$0xf]
    %v141 = vld [vmem:[%s1 + $0x110] sm:$0xf]
    %v142 = vld [vmem:[%s1 + $0x114] sm:$0xf]
    %v143 = vld [vmem:[%s1 + $0x118] sm:$0xf]
    %v144 = vld [vmem:[%s1 + $0x11c] sm:$0xf]
    %v145 = vld [vmem:[%s1 + $0x120] sm:$0xf]
    %v146 = vld [vmem:[%s1 + $0x124] sm:$0xf]
    %v147 = vld [vmem:[%s1 + $0x128] sm:$0xf]
    %v148 = vld [vmem:[%s1 + $0x12c] sm:$0xf]
    %v149 = vld [vmem:[%s1 + $0x130] sm:$0xf]
    %v150 = vld [vmem:[%s1 + $0x134] sm:$0xf]
    %v151 = vld [vmem:[%s1 + $0x138] sm:$0xf]
    %v152 = vld [vmem:[%s1 + $0x13c] sm:$0xf]
    %v153 = vld [vmem:[%s1 + $0x140] sm:$0xf]
    %v154 = vld [vmem:[%s1 + $0x144] sm:$0xf]
    %v155 = vld [vmem:[%s1 + $0x148] sm:$0xf]
    %v156 = vld [vmem:[%s1 + $0x14c] sm:$0xf]
    %v157 = vld [vmem:[%s1 + $0x150] sm:$0xf]
    %v158 = vld [vmem:[%s1 + $0x154] sm:$0xf]
    %v159 = vld [vmem:[%s1 + $0x158] sm:$0xf]
    %v160 = vld [vmem:[%s1 + $0x15c] sm:$0xf]
    %v161 = vld [vmem:[%s1 + $0x160] sm:$0xf]
    %v162 = vld [vmem:[%s1 + $0x164] sm:$0xf]
    %v163 = vld [vmem:[%s1 + $0x168] sm:$0xf]
    %v164 = vld [vmem:[%s1 + $0x16c] sm:$0xf]
    %v165 = vld [vmem:[%s1 + $0x170] sm:$0xf]
    %v166 = vld [vmem:[%s1 + $0x174] sm:$0xf]
    %v167 = vld [vmem:[%s1 + $0x178] sm:$0xf]
    %v168 = vld [vmem:[%s1 + $0x17c] sm:$0xf]
    %v169 = vld [vmem:[%s1 + $0x180] sm:$0xf]
    %v170 = vld [vmem:[%s1 + $0x184] sm:$0xf]
    %v171 = vld [vmem:[%s2] sm:$0x1]
    %v173 = vlaneseq
    %v174 = vshrl.u32 %v173, 7
    %v175 = vsub.s32 0, %v174
    %v176 = vrot.slane %v171, %v175
    %v276 = vunpack.c.l.b16 %v73
    %v277 = vunpack.c.l.b16 %v74
    %v278 = vunpack.c.l.b16 %v75
    %v279 = vunpack.c.l.b16 %v76
    %v280 = vunpack.c.l.b16 %v77
    %v281 = vunpack.c.l.b16 %v78
    %v282 = vunpack.c.l.b16 %v79
    %v283 = vunpack.c.l.b16 %v80
    %v284 = vunpack.c.l.b16 %v81
    %v285 = vunpack.c.l.b16 %v82
    %v286 = vunpack.c.l.b16 %v83
    %v287 = vunpack.c.l.b16 %v84
    %v288 = vunpack.c.l.b16 %v85
    %v289 = vunpack.c.l.b16 %v86
    %v290 = vunpack.c.l.b16 %v87
    %v291 = vunpack.c.l.b16 %v88
    %v292 = vunpack.c.l.b16 %v89
    %v293 = vunpack.c.l.b16 %v90
    %v294 = vunpack.c.l.b16 %v91
    %v295 = vunpack.c.l.b16 %v92
    %v296 = vunpack.c.l.b16 %v93
    %v297 = vunpack.c.l.b16 %v94
    %v298 = vunpack.c.l.b16 %v95
    %v299 = vunpack.c.l.b16 %v96
    %v300 = vunpack.c.l.b16 %v97
    %v301 = vunpack.c.l.b16 %v98
    %v302 = vunpack.c.l.b16 %v99
    %v303 = vunpack.c.l.b16 %v100
    %v304 = vunpack.c.l.b16 %v101
    %v305 = vunpack.c.l.b16 %v102
    %v306 = vunpack.c.l.b16 %v103
    %v307 = vunpack.c.l.b16 %v104
    %v308 = vunpack.c.l.b16 %v105
    %v309 = vunpack.c.l.b16 %v106
    %v310 = vunpack.c.l.b16 %v107
    %v311 = vunpack.c.l.b16 %v108
    %v312 = vunpack.c.l.b16 %v109
    %v313 = vunpack.c.l.b16 %v110
    %v314 = vunpack.c.l.b16 %v111
    %v315 = vunpack.c.l.b16 %v112
    %v316 = vunpack.c.l.b16 %v113
    %v317 = vunpack.c.l.b16 %v114
    %v318 = vunpack.c.l.b16 %v115
    %v319 = vunpack.c.l.b16 %v116
    %v320 = vunpack.c.l.b16 %v117
    %v321 = vunpack.c.l.b16 %v118
    %v322 = vunpack.c.l.b16 %v119
    %v323 = vunpack.c.l.b16 %v120
    %v324 = vunpack.c.l.b16 %v121
    %v325 = vunpack.c.l.b16 %v122
    %v326 = vunpack.c.l.b16 %v123
    %v327 = vunpack.c.l.b16 %v124
    %v328 = vunpack.c.l.b16 %v125
    %v329 = vunpack.c.l.b16 %v126
    %v330 = vunpack.c.l.b16 %v127
    %v331 = vunpack.c.l.b16 %v128
    %v332 = vunpack.c.l.b16 %v129
    %v333 = vunpack.c.l.b16 %v130
    %v334 = vunpack.c.l.b16 %v131
    %v335 = vunpack.c.l.b16 %v132
    %v336 = vunpack.c.l.b16 %v133
    %v337 = vunpack.c.l.b16 %v134
    %v338 = vunpack.c.l.b16 %v135
    %v339 = vunpack.c.l.b16 %v136
    %v340 = vunpack.c.l.b16 %v137
    %v341 = vunpack.c.l.b16 %v138
    %v342 = vunpack.c.l.b16 %v139
    %v343 = vunpack.c.l.b16 %v140
    %v344 = vunpack.c.l.b16 %v141
    %v345 = vunpack.c.l.b16 %v142
    %v346 = vunpack.c.l.b16 %v143
    %v347 = vunpack.c.l.b16 %v144
    %v348 = vunpack.c.l.b16 %v145
    %v349 = vunpack.c.l.b16 %v146
    %v350 = vunpack.c.l.b16 %v147
    %v351 = vunpack.c.l.b16 %v148
    %v352 = vunpack.c.l.b16 %v149
    %v353 = vunpack.c.l.b16 %v150
    %v354 = vunpack.c.l.b16 %v151
    %v355 = vunpack.c.l.b16 %v152
    %v356 = vunpack.c.l.b16 %v153
    %v357 = vunpack.c.l.b16 %v154
    %v358 = vunpack.c.l.b16 %v155
    %v359 = vunpack.c.l.b16 %v156
    %v360 = vunpack.c.l.b16 %v157
    %v361 = vunpack.c.l.b16 %v158
    %v362 = vunpack.c.l.b16 %v159
    %v363 = vunpack.c.l.b16 %v160
    %v364 = vunpack.c.l.b16 %v161
    %v365 = vunpack.c.l.b16 %v162
    %v366 = vunpack.c.l.b16 %v163
    %v367 = vunpack.c.l.b16 %v164
    %v368 = vunpack.c.l.b16 %v165
    %v369 = vunpack.c.l.b16 %v166
    %v370 = vunpack.c.l.b16 %v167
    %v371 = vunpack.c.l.b16 %v168
    %v372 = vunpack.c.l.b16 %v169
    %v373 = vunpack.c.l.b16 %v170
    %v374 = vpack.c.b16 %v277, %v276
    %v375 = vpack.c.b16 %v279, %v278
    %v376 = vpack.c.b16 %v281, %v280
    %v377 = vpack.c.b16 %v283, %v282
    %v378 = vpack.c.b16 %v285, %v284
    %v379 = vpack.c.b16 %v287, %v286
    %v380 = vpack.c.b16 %v289, %v288
    %v381 = vpack.c.b16 %v291, %v290
    %v382 = vpack.c.b16 %v293, %v292
    %v383 = vpack.c.b16 %v295, %v294
    %v384 = vpack.c.b16 %v297, %v296
    %v385 = vpack.c.b16 %v299, %v298
    %v386 = vpack.c.b16 %v301, %v300
    %v387 = vpack.c.b16 %v303, %v302
    %v388 = vpack.c.b16 %v305, %v304
    %v389 = vpack.c.b16 %v307, %v306
    %v390 = vpack.c.b16 %v309, %v308
    %v391 = vpack.c.b16 %v311, %v310
    %v392 = vpack.c.b16 %v313, %v312
    %v393 = vpack.c.b16 %v315, %v314
    %v394 = vpack.c.b16 %v317, %v316
    %v395 = vpack.c.b16 %v319, %v318
    %v396 = vpack.c.b16 %v321, %v320
    %v397 = vpack.c.b16 %v323, %v322
    %v398 = vpack.c.b16 %v325, %v324
    %v399 = vpack.c.b16 %v327, %v326
    %v400 = vpack.c.b16 %v329, %v328
    %v401 = vpack.c.b16 %v331, %v330
    %v402 = vpack.c.b16 %v333, %v332
    %v403 = vpack.c.b16 %v335, %v334
    %v404 = vpack.c.b16 %v337, %v336
    %v405 = vpack.c.b16 %v339, %v338
    %v406 = vpack.c.b16 %v341, %v340
    %v407 = vpack.c.b16 %v343, %v342
    %v408 = vpack.c.b16 %v345, %v344
    %v409 = vpack.c.b16 %v347, %v346
    %v410 = vpack.c.b16 %v349, %v348
    %v411 = vpack.c.b16 %v351, %v350
    %v412 = vpack.c.b16 %v353, %v352
    %v413 = vpack.c.b16 %v355, %v354
    %v414 = vpack.c.b16 %v357, %v356
    %v415 = vpack.c.b16 %v359, %v358
    %v416 = vpack.c.b16 %v361, %v360
    %v417 = vpack.c.b16 %v363, %v362
    %v418 = vpack.c.b16 %v365, %v364
    %v419 = vpack.c.b16 %v367, %v366
    %v420 = vpack.c.b16 %v369, %v368
    %v421 = vpack.c.b16 %v371, %v370
    %v422 = vpack.c.b16 %v373, %v372
    %vm472 = vcmask 130048
    %v474 = vsel %vm472, %v72, 0
    %476 = vmatprep.subr.bf16.mxu0 0
    %477 = vmatpush1.bf16.msra.mxu0 %v374
    %478 = vmatprep.subr.bf16.mxu0 0
    %479 = vmatpush1.bf16.msra.mxu0 %v375
    %480 = vmatprep.subr.bf16.mxu0 0
    %481 = vmatpush1.bf16.msra.mxu0 %v376
    %482 = vmatprep.subr.bf16.mxu0 0
    %483 = vmatpush1.bf16.msra.mxu0 %v377
    %484 = vmatprep.subr.bf16.mxu0 0
    %485 = vmatpush1.bf16.msra.mxu0 %v378
    %486 = vmatprep.subr.bf16.mxu0 0
    %487 = vmatpush1.bf16.msra.mxu0 %v379
    %488 = vmatprep.subr.bf16.mxu0 0
    %489 = vmatpush1.bf16.msra.mxu0 %v380
    %490 = vmatprep.subr.bf16.mxu0 0
    %491 = vmatpush1.bf16.msra.mxu0 %v381
    %492 = vmatprep.subr.bf16.mxu0 0
    %493 = vmatpush1.bf16.msra.mxu0 %v382
    %494 = vmatprep.subr.bf16.mxu0 0
    %495 = vmatpush1.bf16.msra.mxu0 %v383
    %496 = vmatprep.subr.bf16.mxu0 0
    %497 = vmatpush1.bf16.msra.mxu0 %v384
    %498 = vmatprep.subr.bf16.mxu0 0
    %499 = vmatpush1.bf16.msra.mxu0 %v385
    %500 = vmatprep.subr.bf16.mxu0 0
    %501 = vmatpush1.bf16.msra.mxu0 %v386
    %502 = vmatprep.subr.bf16.mxu0 0
    %503 = vmatpush1.bf16.msra.mxu0 %v387
    %504 = vmatprep.subr.bf16.mxu0 0
    %505 = vmatpush1.bf16.msra.mxu0 %v388
    %506 = vmatprep.subr.bf16.mxu0 0
    %507 = vmatpush1.bf16.msra.mxu0 %v389
    %508 = vmatprep.mubr.bf16.mxu0 %v67
    %509 = vmatmul.mubr.bf16.gmra.mrb[0].mxu0 %v66
    %v510 = vpop.f32.mrb[0].mxu0
    %v511 = vadd.f32 %v176, %v510
    %v512 = vpop.f32.mrb[0].mxu0
    %v513 = vpop.f32.mrb[0].mxu0
    %v514 = vadd.f32 %v176, %v513
    %v515 = vpop.f32.mrb[0].mxu0
    %516 = vdwg.mxu0
    %517 = vmatprep.subr.bf16.mxu0 0
    %518 = vmatpush1.bf16.msra.mxu0 %v390
    %519 = vmatprep.subr.bf16.mxu0 0
    %520 = vmatpush1.bf16.msra.mxu0 %v391
    %521 = vmatprep.subr.bf16.mxu0 0
    %522 = vmatpush1.bf16.msra.mxu0 %v392
    %523 = vmatprep.subr.bf16.mxu0 0
    %524 = vmatpush1.bf16.msra.mxu0 %v393
    %525 = vmatprep.subr.bf16.mxu0 0
    %526 = vmatpush1.bf16.msra.mxu0 %v394
    %527 = vmatprep.subr.bf16.mxu0 0
    %528 = vmatpush1.bf16.msra.mxu0 %v395
    %529 = vmatprep.subr.bf16.mxu0 0
    %530 = vmatpush1.bf16.msra.mxu0 %v396
    %531 = vmatprep.subr.bf16.mxu0 0
    %532 = vmatpush1.bf16.msra.mxu0 %v397
    %533 = vmatprep.subr.bf16.mxu0 0
    %534 = vmatpush1.bf16.msra.mxu0 %v398
    %535 = vmatprep.subr.bf16.mxu0 0
    %536 = vmatpush1.bf16.msra.mxu0 %v399
    %537 = vmatprep.subr.bf16.mxu0 0
    %538 = vmatpush1.bf16.msra.mxu0 %v400
    %539 = vmatprep.subr.bf16.mxu0 0
    %540 = vmatpush1.bf16.msra.mxu0 %v401
    %541 = vmatprep.subr.bf16.mxu0 0
    %542 = vmatpush1.bf16.msra.mxu0 %v402
    %543 = vmatprep.subr.bf16.mxu0 0
    %544 = vmatpush1.bf16.msra.mxu0 %v403
    %545 = vmatprep.subr.bf16.mxu0 0
    %546 = vmatpush1.bf16.msra.mxu0 %v404
    %547 = vmatprep.subr.bf16.mxu0 0
    %548 = vmatpush1.bf16.msra.mxu0 %v405
    %549 = vmatprep.mubr.bf16.mxu0 %v69
    %550 = vmatmul.mubr.bf16.gmra.mrb[0].mxu0 %v68
    %v551 = vpop.f32.mrb[0].mxu0
    %v552 = vadd.f32 %v511, %v551
    %v553 = vpop.f32.mrb[0].mxu0
    %v554 = vpop.f32.mrb[0].mxu0
    %v555 = vadd.f32 %v514, %v554
    %v556 = vpop.f32.mrb[0].mxu0
    %557 = vdwg.mxu0
    %558 = vmatprep.subr.bf16.mxu0 0
    %559 = vmatpush1.bf16.msra.mxu0 %v406
    %560 = vmatprep.subr.bf16.mxu0 0
    %561 = vmatpush1.bf16.msra.mxu0 %v407
    %562 = vmatprep.subr.bf16.mxu0 0
    %563 = vmatpush1.bf16.msra.mxu0 %v408
    %564 = vmatprep.subr.bf16.mxu0 0
    %565 = vmatpush1.bf16.msra.mxu0 %v409
    %566 = vmatprep.subr.bf16.mxu0 0
    %567 = vmatpush1.bf16.msra.mxu0 %v410
    %568 = vmatprep.subr.bf16.mxu0 0
    %569 = vmatpush1.bf16.msra.mxu0 %v411
    %570 = vmatprep.subr.bf16.mxu0 0
    %571 = vmatpush1.bf16.msra.mxu0 %v412
    %572 = vmatprep.subr.bf16.mxu0 0
    %573 = vmatpush1.bf16.msra.mxu0 %v413
    %574 = vmatprep.subr.bf16.mxu0 0
    %575 = vmatpush1.bf16.msra.mxu0 %v414
    %576 = vmatprep.subr.bf16.mxu0 0
    %577 = vmatpush1.bf16.msra.mxu0 %v415
    %578 = vmatprep.subr.bf16.mxu0 0
    %579 = vmatpush1.bf16.msra.mxu0 %v416
    %580 = vmatprep.subr.bf16.mxu0 0
    %581 = vmatpush1.bf16.msra.mxu0 %v417
    %582 = vmatprep.subr.bf16.mxu0 0
    %583 = vmatpush1.bf16.msra.mxu0 %v418
    %584 = vmatprep.subr.bf16.mxu0 0
    %585 = vmatpush1.bf16.msra.mxu0 %v419
    %586 = vmatprep.subr.bf16.mxu0 0
    %587 = vmatpush1.bf16.msra.mxu0 %v420
    %588 = vmatprep.subr.bf16.mxu0 0
    %589 = vmatpush1.bf16.msra.mxu0 %v421
    %590 = vmatprep.mubr.bf16.mxu0 %v71
    %591 = vmatmul.mubr.bf16.gmra.mrb[0].mxu0 %v70
    %v592 = vpop.f32.mrb[0].mxu0
    %v593 = vadd.f32 %v552, %v592
    %v594 = vpop.f32.mrb[0].mxu0
    %v595 = vpop.f32.mrb[0].mxu0
    %v596 = vadd.f32 %v555, %v595
    %v597 = vpop.f32.mrb[0].mxu0
    %598 = vdwg.mxu0
    %599 = vmatprep.subr.bf16.mxu0 0
    %600 = vmatpush1.bf16.msra.mxu0 %v422
    %601 = vmatprep.subr.bf16.mxu0 0
    %602 = vmatpush1.bf16.msra.mxu0 0
    %603 = vmatprep.subr.bf16.mxu0 0
    %604 = vmatpush1.bf16.msra.mxu0 0
    %605 = vmatprep.subr.bf16.mxu0 0
    %606 = vmatpush1.bf16.msra.mxu0 0
    %607 = vmatprep.subr.bf16.mxu0 0
    %608 = vmatpush1.bf16.msra.mxu0 0
    %609 = vmatprep.subr.bf16.mxu0 0
    %610 = vmatpush1.bf16.msra.mxu0 0
    %611 = vmatprep.subr.bf16.mxu0 0
    %612 = vmatpush1.bf16.msra.mxu0 0
    %613 = vmatprep.subr.bf16.mxu0 0
    %614 = vmatpush1.bf16.msra.mxu0 0
    %615 = vmatprep.subr.bf16.mxu0 0
    %616 = vmatpush1.bf16.msra.mxu0 0
    %617 = vmatprep.subr.bf16.mxu0 0
    %618 = vmatpush1.bf16.msra.mxu0 0
    %619 = vmatprep.subr.bf16.mxu0 0
    %620 = vmatpush1.bf16.msra.mxu0 0
    %621 = vmatprep.subr.bf16.mxu0 0
    %622 = vmatpush1.bf16.msra.mxu0 0
    %623 = vmatprep.subr.bf16.mxu0 0
    %624 = vmatpush1.bf16.msra.mxu0 0
    %625 = vmatprep.subr.bf16.mxu0 0
    %626 = vmatpush1.bf16.msra.mxu0 0
    %627 = vmatprep.subr.bf16.mxu0 0
    %628 = vmatpush1.bf16.msra.mxu0 0
    %629 = vmatprep.subr.bf16.mxu0 0
    %630 = vmatpush1.bf16.msra.mxu0 0
    %631 = vmatprep.mubr.bf16.mxu0 0
    %632 = vmatmul.mubr.bf16.gmra.mrb[0].mxu0 %v474
    %v633 = vpop.f32.mrb[0].mxu0
    %v634 = vadd.f32 %v593, %v633
    %v635 = vpop.f32.mrb[0].mxu0
    %v636 = vpop.f32.mrb[0].mxu0
    %v637 = vadd.f32 %v596, %v636
    %v638 = vpop.f32.mrb[0].mxu0
    %639 = vdwg.mxu0
    %v640 = vmax.f32 %v634, 0.0
    %v641 = vmax.f32 %v637, 0.0
    %v642 = vpack.c.bf16 %v641, %v640
    %v643 = vld [vmem:[%s3] sm:$0xf]
    %v644 = vld [vmem:[%s3 + $0x4] sm:$0xf]
    %v645 = vld [vmem:[%s3 + $0x8] sm:$0xf]
    %v646 = vld [vmem:[%s3 + $0xc] sm:$0xf]
    %v647 = vld [vmem:[%s3 + $0x10] sm:$0xf]
    %v648 = vld [vmem:[%s3 + $0x14] sm:$0xf]
    %v649 = vld [vmem:[%s3 + $0x18] sm:$0xf]
    %v650 = vld [vmem:[%s3 + $0x1c] sm:$0xf]
    %v651 = vld [vmem:[%s3 + $0x20] sm:$0xf]
    %v652 = vld [vmem:[%s3 + $0x24] sm:$0xf]
    %v653 = vld [vmem:[%s3 + $0x28] sm:$0xf]
    %v654 = vld [vmem:[%s3 + $0x2c] sm:$0xf]
    %v655 = vld [vmem:[%s3 + $0x30] sm:$0xf]
    %v656 = vld [vmem:[%s3 + $0x34] sm:$0xf]
    %v657 = vld [vmem:[%s3 + $0x38] sm:$0xf]
    %v658 = vld [vmem:[%s3 + $0x3c] sm:$0xf]
    %v659 = vld [vmem:[%s4] sm:$0x1]
    %v661 = vlaneseq
    %v662 = vshrl.u32 %v661, 7
    %v663 = vsub.s32 0, %v662
    %v664 = vrot.slane %v659, %v663
    %v682 = vunpack.c.l.b16 %v643
    %v683 = vunpack.c.l.b16 %v644
    %v684 = vunpack.c.l.b16 %v645
    %v685 = vunpack.c.l.b16 %v646
    %v686 = vunpack.c.l.b16 %v647
    %v687 = vunpack.c.l.b16 %v648
    %v688 = vunpack.c.l.b16 %v649
    %v689 = vunpack.c.l.b16 %v650
    %v690 = vunpack.c.l.b16 %v651
    %v691 = vunpack.c.l.b16 %v652
    %v692 = vunpack.c.l.b16 %v653
    %v693 = vunpack.c.l.b16 %v654
    %v694 = vunpack.c.l.b16 %v655
    %v695 = vunpack.c.l.b16 %v656
    %v696 = vunpack.c.l.b16 %v657
    %v697 = vunpack.c.l.b16 %v658
    %v698 = vpack.c.b16 %v683, %v682
    %v699 = vpack.c.b16 %v685, %v684
    %v700 = vpack.c.b16 %v687, %v686
    %v701 = vpack.c.b16 %v689, %v688
    %v702 = vpack.c.b16 %v691, %v690
    %v703 = vpack.c.b16 %v693, %v692
    %v704 = vpack.c.b16 %v695, %v694
    %v705 = vpack.c.b16 %v697, %v696
    %714 = vmatprep.subr.bf16.mxu0 0
    %715 = vmatpush1.bf16.msra.mxu0 %v698
    %716 = vmatprep.subr.bf16.mxu0 0
    %717 = vmatpush1.bf16.msra.mxu0 %v699
    %718 = vmatprep.subr.bf16.mxu0 0
    %719 = vmatpush1.bf16.msra.mxu0 %v700
    %720 = vmatprep.subr.bf16.mxu0 0
    %721 = vmatpush1.bf16.msra.mxu0 %v701
    %722 = vmatprep.subr.bf16.mxu0 0
    %723 = vmatpush1.bf16.msra.mxu0 %v702
    %724 = vmatprep.subr.bf16.mxu0 0
    %725 = vmatpush1.bf16.msra.mxu0 %v703
    %726 = vmatprep.subr.bf16.mxu0 0
    %727 = vmatpush1.bf16.msra.mxu0 %v704
    %728 = vmatprep.subr.bf16.mxu0 0
    %729 = vmatpush1.bf16.msra.mxu0 %v705
    %730 = vmatprep.subr.bf16.mxu0 0
    %731 = vmatpush1.bf16.msra.mxu0 0
    %732 = vmatprep.subr.bf16.mxu0 0
    %733 = vmatpush1.bf16.msra.mxu0 0
    %734 = vmatprep.subr.bf16.mxu0 0
    %735 = vmatpush1.bf16.msra.mxu0 0
    %736 = vmatprep.subr.bf16.mxu0 0
    %737 = vmatpush1.bf16.msra.mxu0 0
    %738 = vmatprep.subr.bf16.mxu0 0
    %739 = vmatpush1.bf16.msra.mxu0 0
    %740 = vmatprep.subr.bf16.mxu0 0
    %741 = vmatpush1.bf16.msra.mxu0 0
    %742 = vmatprep.subr.bf16.mxu0 0
    %743 = vmatpush1.bf16.msra.mxu0 0
    %744 = vmatprep.subr.bf16.mxu0 0
    %745 = vmatpush1.bf16.msra.mxu0 0
    %746 = vmatprep.mubr.bf16.mxu0 0
    %747 = vmatmul.mubr.bf16.gmra.mrb[0].mxu0 %v642
    %v748 = vpop.f32.mrb[0].mxu0
    %v749 = vadd.f32 %v664, %v748
    %v750 = vpop.f32.mrb[0].mxu0
    %v751 = vpop.f32.mrb[0].mxu0
    %v752 = vadd.f32 %v664, %v751
    %v753 = vpop.f32.mrb[0].mxu0
    %754 = vdwg.mxu0
    %v755 = vmax.f32 %v749, 0.0
    %v756 = vmax.f32 %v752, 0.0
    %v757 = vpack.c.bf16 %v756, %v755
    %v758 = vld [vmem:[%s5] sm:$0xf]
    %v759 = vld [vmem:[%s5 + $0x4] sm:$0xf]
    %v760 = vld [vmem:[%s5 + $0x8] sm:$0xf]
    %v761 = vld [vmem:[%s5 + $0xc] sm:$0xf]
    %v762 = vld [vmem:[%s5 + $0x10] sm:$0xf]
    %v763 = vld [vmem:[%s5 + $0x14] sm:$0xf]
    %v764 = vld [vmem:[%s5 + $0x18] sm:$0xf]
    %v765 = vld [vmem:[%s5 + $0x1c] sm:$0xf]
    %v766 = vld [vmem:[%s6] sm:$0x1]
    %v768 = vlaneseq
    %v769 = vshrl.u32 %v768, 7
    %v770 = vsub.s32 0, %v769
    %v771 = vrot.slane %v766, %v770
    %v781 = vunpack.c.l.b16 %v758
    %v782 = vunpack.c.l.b16 %v759
    %v783 = vunpack.c.l.b16 %v760
    %v784 = vunpack.c.l.b16 %v761
    %v785 = vunpack.c.l.b16 %v762
    %v786 = vunpack.c.l.b16 %v763
    %v787 = vunpack.c.l.b16 %v764
    %v788 = vunpack.c.l.b16 %v765
    %v789 = vpack.c.b16 %v782, %v781
    %v790 = vpack.c.b16 %v784, %v783
    %v791 = vpack.c.b16 %v786, %v785
    %v792 = vpack.c.b16 %v788, %v787
    %vm797 = vcmask 523264
    %v799 = vsel %vm797, %v757, 0
    %801 = vmatprep.subr.bf16.mxu0 0
    %802 = vmatpush1.bf16.msra.mxu0 %v789
    %803 = vmatprep.subr.bf16.mxu0 0
    %804 = vmatpush1.bf16.msra.mxu0 %v790
    %805 = vmatprep.subr.bf16.mxu0 0
    %806 = vmatpush1.bf16.msra.mxu0 %v791
    %807 = vmatprep.subr.bf16.mxu0 0
    %808 = vmatpush1.bf16.msra.mxu0 %v792
    %809 = vmatprep.subr.bf16.mxu0 0
    %810 = vmatpush1.bf16.msra.mxu0 0
    %811 = vmatprep.subr.bf16.mxu0 0
    %812 = vmatpush1.bf16.msra.mxu0 0
    %813 = vmatprep.subr.bf16.mxu0 0
    %814 = vmatpush1.bf16.msra.mxu0 0
    %815 = vmatprep.subr.bf16.mxu0 0
    %816 = vmatpush1.bf16.msra.mxu0 0
    %817 = vmatprep.subr.bf16.mxu0 0
    %818 = vmatpush1.bf16.msra.mxu0 0
    %819 = vmatprep.subr.bf16.mxu0 0
    %820 = vmatpush1.bf16.msra.mxu0 0
    %821 = vmatprep.subr.bf16.mxu0 0
    %822 = vmatpush1.bf16.msra.mxu0 0
    %823 = vmatprep.subr.bf16.mxu0 0
    %824 = vmatpush1.bf16.msra.mxu0 0
    %825 = vmatprep.subr.bf16.mxu0 0
    %826 = vmatpush1.bf16.msra.mxu0 0
    %827 = vmatprep.subr.bf16.mxu0 0
    %828 = vmatpush1.bf16.msra.mxu0 0
    %829 = vmatprep.subr.bf16.mxu0 0
    %830 = vmatpush1.bf16.msra.mxu0 0
    %831 = vmatprep.subr.bf16.mxu0 0
    %832 = vmatpush1.bf16.msra.mxu0 0
    %833 = vmatprep.mubr.bf16.mxu0 0
    %834 = vmatmul.mubr.bf16.gmra.mrb[0].mxu0 %v799
    %v835 = vpop.f32.mrb[0].mxu0
    %v836 = vadd.f32 %v771, %v835
    %v837 = vpop.f32.mrb[0].mxu0
    %v838 = vpop.f32.mrb[0].mxu0
    %v839 = vadd.f32 %v771, %v838
    %v840 = vpop.f32.mrb[0].mxu0
    %841 = vdwg.mxu0
    %v842 = vmax.f32 %v836, 0.0
    %v843 = vmax.f32 %v839, 0.0
    %v844 = vpack.c.bf16 %v843, %v842
    %v845 = vld [vmem:[%s7] sm:$0xf]
    %v846 = vld [vmem:[%s7 + $0x4] sm:$0x3]
    %v847 = vld [vmem:[%s8] sm:$0x1]
    %v849 = vlaneseq
    %v850 = vshrl.u32 %v849, 7
    %v851 = vsub.s32 0, %v850
    %v852 = vrot.slane %v847, %v851
    %v856 = vunpack.c.l.b16 %v845
    %v857 = vunpack.c.l.b16 %v846
    %v858 = vpack.c.b16 %v857, %v856
    %vm859 = vcmask 97280
    %v861 = vsel %vm859, %v844, 0
    %vm863 = vcmask 1045504
    %v865 = vsel %vm863, %v858, 0
    %867 = vmatprep.subr.bf16.mxu0 0
    %868 = vmatpush1.bf16.msra.mxu0 %v865
    %869 = vmatprep.subr.bf16.mxu0 0
    %870 = vmatpush1.bf16.msra.mxu0 0
    %871 = vmatprep.subr.bf16.mxu0 0
    %872 = vmatpush1.bf16.msra.mxu0 0
    %873 = vmatprep.subr.bf16.mxu0 0
    %874 = vmatpush1.bf16.msra.mxu0 0
    %875 = vmatprep.subr.bf16.mxu0 0
    %876 = vmatpush1.bf16.msra.mxu0 0
    %877 = vmatprep.subr.bf16.mxu0 0
    %878 = vmatpush1.bf16.msra.mxu0 0
    %879 = vmatprep.subr.bf16.mxu0 0
    %880 = vmatpush1.bf16.msra.mxu0 0
    %881 = vmatprep.subr.bf16.mxu0 0
    %882 = vmatpush1.bf16.msra.mxu0 0
    %883 = vmatprep.subr.bf16.mxu0 0
    %884 = vmatpush1.bf16.msra.mxu0 0
    %885 = vmatprep.subr.bf16.mxu0 0
    %886 = vmatpush1.bf16.msra.mxu0 0
    %887 = vmatprep.subr.bf16.mxu0 0
    %888 = vmatpush1.bf16.msra.mxu0 0
    %889 = vmatprep.subr.bf16.mxu0 0
    %890 = vmatpush1.bf16.msra.mxu0 0
    %891 = vmatprep.subr.bf16.mxu0 0
    %892 = vmatpush1.bf16.msra.mxu0 0
    %893 = vmatprep.subr.bf16.mxu0 0
    %894 = vmatpush1.bf16.msra.mxu0 0
    %895 = vmatprep.subr.bf16.mxu0 0
    %896 = vmatpush1.bf16.msra.mxu0 0
    %897 = vmatprep.subr.bf16.mxu0 0
    %898 = vmatpush1.bf16.msra.mxu0 0
    %899 = vmatprep.mubr.bf16.mxu0 0
    %900 = vmatmul.mubr.bf16.gmra.mrb[0].mxu0 %v861
    %v901 = vpop.f32.mrb[0].mxu0
    %v902 = vadd.f32 %v852, %v901
    %v903 = vpop.f32.mrb[0].mxu0
    %v904 = vpop.f32.mrb[0].mxu0
    %v905 = vadd.f32 %v852, %v904
    %v906 = vpop.f32.mrb[0].mxu0
    %907 = vdwg.mxu0
    %v908 = vmax.f32 %v902, 0.0
    %v909 = vmax.f32 %v905, 0.0
    %v910 = vpack.c.bf16 %v909, %v908
    %v911 = vld [vmem:[%s9] sm:$0xf]
    %v912 = vld [vmem:[%s9 + $0x4] sm:$0x3]
    %v913 = vld [vmem:[%s10] sm:$0x1]
    %v915 = vlaneseq
    %v916 = vshrl.u32 %v915, 7
    %v917 = vsub.s32 0, %v916
    %v918 = vrot.slane %v913, %v917
    %v922 = vunpack.c.l.b16 %v911
    %v923 = vunpack.c.l.b16 %v912
    %v924 = vpack.c.b16 %v923, %v922
    %v926 = vsel %vm859, %v910, 0
    %v929 = vsel %vm863, %v924, 0
    %931 = vmatprep.subr.bf16.mxu0 0
    %932 = vmatpush1.bf16.msra.mxu0 %v929
    %933 = vmatprep.subr.bf16.mxu0 0
    %934 = vmatpush1.bf16.msra.mxu0 0
    %935 = vmatprep.subr.bf16.mxu0 0
    %936 = vmatpush1.bf16.msra.mxu0 0
    %937 = vmatprep.subr.bf16.mxu0 0
    %938 = vmatpush1.bf16.msra.mxu0 0
    %939 = vmatprep.subr.bf16.mxu0 0
    %940 = vmatpush1.bf16.msra.mxu0 0
    %941 = vmatprep.subr.bf16.mxu0 0
    %942 = vmatpush1.bf16.msra.mxu0 0
    %943 = vmatprep.subr.bf16.mxu0 0
    %944 = vmatpush1.bf16.msra.mxu0 0
    %945 = vmatprep.subr.bf16.mxu0 0
    %946 = vmatpush1.bf16.msra.mxu0 0
    %947 = vmatprep.subr.bf16.mxu0 0
    %948 = vmatpush1.bf16.msra.mxu0 0
    %949 = vmatprep.subr.bf16.mxu0 0
    %950 = vmatpush1.bf16.msra.mxu0 0
    %951 = vmatprep.subr.bf16.mxu0 0
    %952 = vmatpush1.bf16.msra.mxu0 0
    %953 = vmatprep.subr.bf16.mxu0 0
    %954 = vmatpush1.bf16.msra.mxu0 0
    %955 = vmatprep.subr.bf16.mxu0 0
    %956 = vmatpush1.bf16.msra.mxu0 0
    %957 = vmatprep.subr.bf16.mxu0 0
    %958 = vmatpush1.bf16.msra.mxu0 0
    %959 = vmatprep.subr.bf16.mxu0 0
    %960 = vmatpush1.bf16.msra.mxu0 0
    %961 = vmatprep.subr.bf16.mxu0 0
    %962 = vmatpush1.bf16.msra.mxu0 0
    %963 = vmatprep.mubr.bf16.mxu0 0
    %964 = vmatmul.mubr.bf16.gmra.mrb[0].mxu0 %v926
    %v965 = vpop.f32.mrb[0].mxu0
    %v966 = vadd.f32 %v918, %v965
    %v967 = vpop.f32.mrb[0].mxu0
    %v968 = vpop.f32.mrb[0].mxu0
    %v969 = vadd.f32 %v918, %v968
    %v970 = vpop.f32.mrb[0].mxu0
    %971 = vdwg.mxu0
    %v972 = vmax.f32 %v966, 0.0
    %v973 = vmax.f32 %v969, 0.0
    %v974 = vpack.c.bf16 %v973, %v972
    %v975 = vld [vmem:[%s11] sm:$0xf]
    %v976 = vld [vmem:[%s11 + $0x4] sm:$0xf]
    %v977 = vld [vmem:[%s11 + $0x8] sm:$0xf]
    %v978 = vld [vmem:[%s11 + $0xc] sm:$0xf]
    %v979 = vld [vmem:[%s11 + $0x10] sm:$0xf]
    %v980 = vld [vmem:[%s11 + $0x14] sm:$0xf]
    %v981 = vld [vmem:[%s11 + $0x18] sm:$0xf]
    %v982 = vld [vmem:[%s11 + $0x1c] sm:$0xf]
    %v983 = vld [vmem:[%s12] sm:$0x1]
    %v985 = vlaneseq
    %v986 = vshrl.u32 %v985, 7
    %v987 = vsub.s32 0, %v986
    %v988 = vrot.slane %v983, %v987
    %v998 = vunpack.c.l.b16 %v975
    %v999 = vunpack.c.l.b16 %v976
    %v1000 = vunpack.c.l.b16 %v977
    %v1001 = vunpack.c.l.b16 %v978
    %v1002 = vunpack.c.l.b16 %v979
    %v1003 = vunpack.c.l.b16 %v980
    %v1004 = vunpack.c.l.b16 %v981
    %v1005 = vunpack.c.l.b16 %v982
    %v1006 = vpack.c.b16 %v999, %v998
    %v1007 = vpack.c.b16 %v1001, %v1000
    %v1008 = vpack.c.b16 %v1003, %v1002
    %v1009 = vpack.c.b16 %v1005, %v1004
    %v1015 = vsel %vm797, %v974, 0
    %1017 = vmatprep.subr.bf16.mxu0 0
    %1018 = vmatpush1.bf16.msra.mxu0 %v1006
    %1019 = vmatprep.subr.bf16.mxu0 0
    %1020 = vmatpush1.bf16.msra.mxu0 %v1007
    %1021 = vmatprep.subr.bf16.mxu0 0
    %1022 = vmatpush1.bf16.msra.mxu0 %v1008
    %1023 = vmatprep.subr.bf16.mxu0 0
    %1024 = vmatpush1.bf16.msra.mxu0 %v1009
    %1025 = vmatprep.subr.bf16.mxu0 0
    %1026 = vmatpush1.bf16.msra.mxu0 0
    %1027 = vmatprep.subr.bf16.mxu0 0
    %1028 = vmatpush1.bf16.msra.mxu0 0
    %1029 = vmatprep.subr.bf16.mxu0 0
    %1030 = vmatpush1.bf16.msra.mxu0 0
    %1031 = vmatprep.subr.bf16.mxu0 0
    %1032 = vmatpush1.bf16.msra.mxu0 0
    %1033 = vmatprep.subr.bf16.mxu0 0
    %1034 = vmatpush1.bf16.msra.mxu0 0
    %1035 = vmatprep.subr.bf16.mxu0 0
    %1036 = vmatpush1.bf16.msra.mxu0 0
    %1037 = vmatprep.subr.bf16.mxu0 0
    %1038 = vmatpush1.bf16.msra.mxu0 0
    %1039 = vmatprep.subr.bf16.mxu0 0
    %1040 = vmatpush1.bf16.msra.mxu0 0
    %1041 = vmatprep.subr.bf16.mxu0 0
    %1042 = vmatpush1.bf16.msra.mxu0 0
    %1043 = vmatprep.subr.bf16.mxu0 0
    %1044 = vmatpush1.bf16.msra.mxu0 0
    %1045 = vmatprep.subr.bf16.mxu0 0
    %1046 = vmatpush1.bf16.msra.mxu0 0
    %1047 = vmatprep.subr.bf16.mxu0 0
    %1048 = vmatpush1.bf16.msra.mxu0 0
    %1049 = vmatprep.mubr.bf16.mxu0 0
    %1050 = vmatmul.mubr.bf16.gmra.mrb[0].mxu0 %v1015
    %v1051 = vpop.f32.mrb[0].mxu0
    %v1052 = vadd.f32 %v988, %v1051
    %v1053 = vpop.f32.mrb[0].mxu0
    %v1054 = vpop.f32.mrb[0].mxu0
    %v1055 = vadd.f32 %v988, %v1054
    %v1056 = vpop.f32.mrb[0].mxu0
    %1057 = vdwg.mxu0
    %v1058 = vmax.f32 %v1052, 0.0
    %v1059 = vmax.f32 %v1055, 0.0
    %v1060 = vpack.c.bf16 %v1059, %v1058
    %v1061 = vld [vmem:[%s13] sm:$0xff]
    %v1062 = vld [vmem:[%s13 + $0x8] sm:$0xff]
    %v1063 = vld [vmem:[%s13 + $0x10] sm:$0xff]
    %v1064 = vld [vmem:[%s13 + $0x18] sm:$0xf]
    %v1065 = vld [vmem:[%s13 + $0x1c] sm:$0xff]
    %v1066 = vld [vmem:[%s13 + $0x24] sm:$0xff]
    %v1067 = vld [vmem:[%s13 + $0x2c] sm:$0xff]
    %v1068 = vld [vmem:[%s13 + $0x34] sm:$0xf]
    %v1069 = vld [vmem:[%s13 + $0x38] sm:$0xff]
    %v1070 = vld [vmem:[%s13 + $0x40] sm:$0xff]
    %v1071 = vld [vmem:[%s13 + $0x48] sm:$0xff]
    %v1072 = vld [vmem:[%s13 + $0x50] sm:$0xf]
    %v1073 = vld [vmem:[%s13 + $0x54] sm:$0xff]
    %v1074 = vld [vmem:[%s13 + $0x5c] sm:$0xff]
    %v1075 = vld [vmem:[%s13 + $0x64] sm:$0xff]
    %v1076 = vld [vmem:[%s13 + $0x6c] sm:$0xf]
    %v1077 = vld [vmem:[%s13 + $0x70] sm:$0xff]
    %v1078 = vld [vmem:[%s13 + $0x78] sm:$0xff]
    %v1079 = vld [vmem:[%s13 + $0x80] sm:$0xff]
    %v1080 = vld [vmem:[%s13 + $0x88] sm:$0xf]
    %v1081 = vld [vmem:[%s13 + $0x8c] sm:$0xff]
    %v1082 = vld [vmem:[%s13 + $0x94] sm:$0xff]
    %v1083 = vld [vmem:[%s13 + $0x9c] sm:$0xff]
    %v1084 = vld [vmem:[%s13 + $0xa4] sm:$0xf]
    %v1085 = vld [vmem:[%s13 + $0xa8] sm:$0xff]
    %v1086 = vld [vmem:[%s13 + $0xb0] sm:$0xff]
    %v1087 = vld [vmem:[%s13 + $0xb8] sm:$0xff]
    %v1088 = vld [vmem:[%s13 + $0xc0] sm:$0xf]
    %v1089 = vld [vmem:[%s13 + $0xc4] sm:$0xff]
    %v1090 = vld [vmem:[%s13 + $0xcc] sm:$0xff]
    %v1091 = vld [vmem:[%s13 + $0xd4] sm:$0xff]
    %v1092 = vld [vmem:[%s13 + $0xdc] sm:$0xf]
    %v1093 = vld [vmem:[%s13 + $0xe0] sm:$0xff]
    %v1094 = vld [vmem:[%s13 + $0xe8] sm:$0xff]
    %v1095 = vld [vmem:[%s13 + $0xf0] sm:$0xff]
    %v1096 = vld [vmem:[%s13 + $0xf8] sm:$0xf]
    %v1097 = vld [vmem:[%s13 + $0xfc] sm:$0xff]
    %v1098 = vld [vmem:[%s13 + $0x104] sm:$0xff]
    %v1099 = vld [vmem:[%s13 + $0x10c] sm:$0xff]
    %v1100 = vld [vmem:[%s13 + $0x114] sm:$0xf]
    %v1101 = vld [vmem:[%s13 + $0x118] sm:$0xff]
    %v1102 = vld [vmem:[%s13 + $0x120] sm:$0xff]
    %v1103 = vld [vmem:[%s13 + $0x128] sm:$0xff]
    %v1104 = vld [vmem:[%s13 + $0x130] sm:$0xf]
    %v1105 = vld [vmem:[%s13 + $0x134] sm:$0xff]
    %v1106 = vld [vmem:[%s13 + $0x13c] sm:$0xff]
    %v1107 = vld [vmem:[%s13 + $0x144] sm:$0xff]
    %v1108 = vld [vmem:[%s13 + $0x14c] sm:$0xf]
    %v1109 = vld [vmem:[%s13 + $0x150] sm:$0xff]
    %v1110 = vld [vmem:[%s13 + $0x158] sm:$0xff]
    %v1111 = vld [vmem:[%s13 + $0x160] sm:$0xff]
    %v1112 = vld [vmem:[%s13 + $0x168] sm:$0xf]
    %v1113 = vld [vmem:[%s13 + $0x16c] sm:$0xff]
    %v1114 = vld [vmem:[%s13 + $0x174] sm:$0xff]
    %v1115 = vld [vmem:[%s13 + $0x17c] sm:$0xff]
    %v1116 = vld [vmem:[%s13 + $0x184] sm:$0xf]
    %v1117 = vld [vmem:[%s13 + $0x188] sm:$0xff]
    %v1118 = vld [vmem:[%s13 + $0x190] sm:$0xff]
    %v1119 = vld [vmem:[%s13 + $0x198] sm:$0xff]
    %v1120 = vld [vmem:[%s13 + $0x1a0] sm:$0xf]
    %v1121 = vld [vmem:[%s13 + $0x1a4] sm:$0xff]
    %v1122 = vld [vmem:[%s13 + $0x1ac] sm:$0xff]
    %v1123 = vld [vmem:[%s13 + $0x1b4] sm:$0xff]
    %v1124 = vld [vmem:[%s13 + $0x1bc] sm:$0xf]
    %v1125 = vld [vmem:[%s14] sm:$0x7f]
    %v1127 = vlaneseq
    %v1128 = vshrl.u32 %v1127, 7
    %v1129 = vsub.s32 0, %v1128
    %v1130 = vrot.slane %v1125, %v1129
    %v1131 = vlaneseq
    %v1132 = vshrl.u32 %v1131, 7
    %v1133 = vsub.s32 1, %v1132
    %v1134 = vrot.slane %v1125, %v1133
    %v1135 = vlaneseq
    %v1136 = vshrl.u32 %v1135, 7
    %v1137 = vsub.s32 2, %v1136
    %v1138 = vrot.slane %v1125, %v1137
    %v1139 = vlaneseq
    %v1140 = vshrl.u32 %v1139, 7
    %v1141 = vsub.s32 3, %v1140
    %v1142 = vrot.slane %v1125, %v1141
    %v1143 = vlaneseq
    %v1144 = vshrl.u32 %v1143, 7
    %v1145 = vsub.s32 4, %v1144
    %v1146 = vrot.slane %v1125, %v1145
    %v1147 = vlaneseq
    %v1148 = vshrl.u32 %v1147, 7
    %v1149 = vsub.s32 5, %v1148
    %v1150 = vrot.slane %v1125, %v1149
    %v1151 = vlaneseq
    %v1152 = vshrl.u32 %v1151, 7
    %v1153 = vsub.s32 6, %v1152
    %v1154 = vrot.slane %v1125, %v1153
    %v1226 = vunpack.c.l.b16 %v1061
    %v1227 = vunpack.c.h.b16 %v1061
    %v1228 = vunpack.c.l.b16 %v1062
    %v1229 = vunpack.c.h.b16 %v1062
    %v1230 = vunpack.c.l.b16 %v1063
    %v1231 = vunpack.c.h.b16 %v1063
    %v1232 = vunpack.c.l.b16 %v1064
    %v1233 = vunpack.c.l.b16 %v1065
    %v1234 = vunpack.c.h.b16 %v1065
    %v1235 = vunpack.c.l.b16 %v1066
    %v1236 = vunpack.c.h.b16 %v1066
    %v1237 = vunpack.c.l.b16 %v1067
    %v1238 = vunpack.c.h.b16 %v1067
    %v1239 = vunpack.c.l.b16 %v1068
    %v1240 = vunpack.c.l.b16 %v1069
    %v1241 = vunpack.c.h.b16 %v1069
    %v1242 = vunpack.c.l.b16 %v1070
    %v1243 = vunpack.c.h.b16 %v1070
    %v1244 = vunpack.c.l.b16 %v1071
    %v1245 = vunpack.c.h.b16 %v1071
    %v1246 = vunpack.c.l.b16 %v1072
    %v1247 = vunpack.c.l.b16 %v1073
    %v1248 = vunpack.c.h.b16 %v1073
    %v1249 = vunpack.c.l.b16 %v1074
    %v1250 = vunpack.c.h.b16 %v1074
    %v1251 = vunpack.c.l.b16 %v1075
    %v1252 = vunpack.c.h.b16 %v1075
    %v1253 = vunpack.c.l.b16 %v1076
    %v1254 = vunpack.c.l.b16 %v1077
    %v1255 = vunpack.c.h.b16 %v1077
    %v1256 = vunpack.c.l.b16 %v1078
    %v1257 = vunpack.c.h.b16 %v1078
    %v1258 = vunpack.c.l.b16 %v1079
    %v1259 = vunpack.c.h.b16 %v1079
    %v1260 = vunpack.c.l.b16 %v1080
    %v1261 = vunpack.c.l.b16 %v1081
    %v1262 = vunpack.c.h.b16 %v1081
    %v1263 = vunpack.c.l.b16 %v1082
    %v1264 = vunpack.c.h.b16 %v1082
    %v1265 = vunpack.c.l.b16 %v1083
    %v1266 = vunpack.c.h.b16 %v1083
    %v1267 = vunpack.c.l.b16 %v1084
    %v1268 = vunpack.c.l.b16 %v1085
    %v1269 = vunpack.c.h.b16 %v1085
    %v1270 = vunpack.c.l.b16 %v1086
    %v1271 = vunpack.c.h.b16 %v1086
    %v1272 = vunpack.c.l.b16 %v1087
    %v1273 = vunpack.c.h.b16 %v1087
    %v1274 = vunpack.c.l.b16 %v1088
    %v1275 = vunpack.c.l.b16 %v1089
    %v1276 = vunpack.c.h.b16 %v1089
    %v1277 = vunpack.c.l.b16 %v1090
    %v1278 = vunpack.c.h.b16 %v1090
    %v1279 = vunpack.c.l.b16 %v1091
    %v1280 = vunpack.c.h.b16 %v1091
    %v1281 = vunpack.c.l.b16 %v1092
    %v1282 = vunpack.c.l.b16 %v1093
    %v1283 = vunpack.c.h.b16 %v1093
    %v1284 = vunpack.c.l.b16 %v1094
    %v1285 = vunpack.c.h.b16 %v1094
    %v1286 = vunpack.c.l.b16 %v1095
    %v1287 = vunpack.c.h.b16 %v1095
    %v1288 = vunpack.c.l.b16 %v1096
    %v1289 = vunpack.c.l.b16 %v1097
    %v1290 = vunpack.c.h.b16 %v1097
    %v1291 = vunpack.c.l.b16 %v1098
    %v1292 = vunpack.c.h.b16 %v1098
    %v1293 = vunpack.c.l.b16 %v1099
    %v1294 = vunpack.c.h.b16 %v1099
    %v1295 = vunpack.c.l.b16 %v1100
    %v1296 = vunpack.c.l.b16 %v1101
    %v1297 = vunpack.c.h.b16 %v1101
    %v1298 = vunpack.c.l.b16 %v1102
    %v1299 = vunpack.c.h.b16 %v1102
    %v1300 = vunpack.c.l.b16 %v1103
    %v1301 = vunpack.c.h.b16 %v1103
    %v1302 = vunpack.c.l.b16 %v1104
    %v1303 = vunpack.c.l.b16 %v1105
    %v1304 = vunpack.c.h.b16 %v1105
    %v1305 = vunpack.c.l.b16 %v1106
    %v1306 = vunpack.c.h.b16 %v1106
    %v1307 = vunpack.c.l.b16 %v1107
    %v1308 = vunpack.c.h.b16 %v1107
    %v1309 = vunpack.c.l.b16 %v1108
    %v1310 = vunpack.c.l.b16 %v1109
    %v1311 = vunpack.c.h.b16 %v1109
    %v1312 = vunpack.c.l.b16 %v1110
    %v1313 = vunpack.c.h.b16 %v1110
    %v1314 = vunpack.c.l.b16 %v1111
    %v1315 = vunpack.c.h.b16 %v1111
    %v1316 = vunpack.c.l.b16 %v1112
    %v1317 = vunpack.c.l.b16 %v1113
    %v1318 = vunpack.c.h.b16 %v1113
    %v1319 = vunpack.c.l.b16 %v1114
    %v1320 = vunpack.c.h.b16 %v1114
    %v1321 = vunpack.c.l.b16 %v1115
    %v1322 = vunpack.c.h.b16 %v1115
    %v1323 = vunpack.c.l.b16 %v1116
    %v1324 = vunpack.c.l.b16 %v1117
    %v1325 = vunpack.c.h.b16 %v1117
    %v1326 = vunpack.c.l.b16 %v1118
    %v1327 = vunpack.c.h.b16 %v1118
    %v1328 = vunpack.c.l.b16 %v1119
    %v1329 = vunpack.c.h.b16 %v1119
    %v1330 = vunpack.c.l.b16 %v1120
    %v1331 = vunpack.c.l.b16 %v1121
    %v1332 = vunpack.c.h.b16 %v1121
    %v1333 = vunpack.c.l.b16 %v1122
    %v1334 = vunpack.c.h.b16 %v1122
    %v1335 = vunpack.c.l.b16 %v1123
    %v1336 = vunpack.c.h.b16 %v1123
    %v1337 = vunpack.c.l.b16 %v1124
    %v1338 = vpack.c.b16 %v1233, %v1226
    %v1339 = vpack.c.b16 %v1234, %v1227
    %v1340 = vpack.c.b16 %v1235, %v1228
    %v1341 = vpack.c.b16 %v1236, %v1229
    %v1342 = vpack.c.b16 %v1237, %v1230
    %v1343 = vpack.c.b16 %v1238, %v1231
    %v1344 = vpack.c.b16 %v1239, %v1232
    %v1345 = vpack.c.b16 %v1247, %v1240
    %v1346 = vpack.c.b16 %v1248, %v1241
    %v1347 = vpack.c.b16 %v1249, %v1242
    %v1348 = vpack.c.b16 %v1250, %v1243
    %v1349 = vpack.c.b16 %v1251, %v1244
    %v1350 = vpack.c.b16 %v1252, %v1245
    %v1351 = vpack.c.b16 %v1253, %v1246
    %v1352 = vpack.c.b16 %v1261, %v1254
    %v1353 = vpack.c.b16 %v1262, %v1255
    %v1354 = vpack.c.b16 %v1263, %v1256
    %v1355 = vpack.c.b16 %v1264, %v1257
    %v1356 = vpack.c.b16 %v1265, %v1258
    %v1357 = vpack.c.b16 %v1266, %v1259
    %v1358 = vpack.c.b16 %v1267, %v1260
    %v1359 = vpack.c.b16 %v1275, %v1268
    %v1360 = vpack.c.b16 %v1276, %v1269
    %v1361 = vpack.c.b16 %v1277, %v1270
    %v1362 = vpack.c.b16 %v1278, %v1271
    %v1363 = vpack.c.b16 %v1279, %v1272
    %v1364 = vpack.c.b16 %v1280, %v1273
    %v1365 = vpack.c.b16 %v1281, %v1274
    %v1366 = vpack.c.b16 %v1289, %v1282
    %v1367 = vpack.c.b16 %v1290, %v1283
    %v1368 = vpack.c.b16 %v1291, %v1284
    %v1369 = vpack.c.b16 %v1292, %v1285
    %v1370 = vpack.c.b16 %v1293, %v1286
    %v1371 = vpack.c.b16 %v1294, %v1287
    %v1372 = vpack.c.b16 %v1295, %v1288
    %v1373 = vpack.c.b16 %v1303, %v1296
    %v1374 = vpack.c.b16 %v1304, %v1297
    %v1375 = vpack.c.b16 %v1305, %v1298
    %v1376 = vpack.c.b16 %v1306, %v1299
    %v1377 = vpack.c.b16 %v1307, %v1300
    %v1378 = vpack.c.b16 %v1308, %v1301
    %v1379 = vpack.c.b16 %v1309, %v1302
    %v1380 = vpack.c.b16 %v1317, %v1310
    %v1381 = vpack.c.b16 %v1318, %v1311
    %v1382 = vpack.c.b16 %v1319, %v1312
    %v1383 = vpack.c.b16 %v1320, %v1313
    %v1384 = vpack.c.b16 %v1321, %v1314
    %v1385 = vpack.c.b16 %v1322, %v1315
    %v1386 = vpack.c.b16 %v1323, %v1316
    %v1387 = vpack.c.b16 %v1331, %v1324
    %v1388 = vpack.c.b16 %v1332, %v1325
    %v1389 = vpack.c.b16 %v1333, %v1326
    %v1390 = vpack.c.b16 %v1334, %v1327
    %v1391 = vpack.c.b16 %v1335, %v1328
    %v1392 = vpack.c.b16 %v1336, %v1329
    %v1393 = vpack.c.b16 %v1337, %v1330
    %1450 = vmatprep.subr.bf16.mxu0 %v1339
    %1451 = vmatpush1.bf16.msra.mxu0 %v1338
    %1452 = vmatprep.subr.bf16.mxu0 %v1346
    %1453 = vmatpush1.bf16.msra.mxu0 %v1345
    %1454 = vmatprep.subr.bf16.mxu0 %v1353
    %1455 = vmatpush1.bf16.msra.mxu0 %v1352
    %1456 = vmatprep.subr.bf16.mxu0 %v1360
    %1457 = vmatpush1.bf16.msra.mxu0 %v1359
    %1458 = vmatprep.subr.bf16.mxu0 %v1367
    %1459 = vmatpush1.bf16.msra.mxu0 %v1366
    %1460 = vmatprep.subr.bf16.mxu0 %v1374
    %1461 = vmatpush1.bf16.msra.mxu0 %v1373
    %1462 = vmatprep.subr.bf16.mxu0 %v1381
    %1463 = vmatpush1.bf16.msra.mxu0 %v1380
    %1464 = vmatprep.subr.bf16.mxu0 %v1388
    %1465 = vmatpush1.bf16.msra.mxu0 %v1387
    %1466 = vmatprep.subr.bf16.mxu0 0
    %1467 = vmatpush1.bf16.msra.mxu0 0
    %1468 = vmatprep.subr.bf16.mxu0 0
    %1469 = vmatpush1.bf16.msra.mxu0 0
    %1470 = vmatprep.subr.bf16.mxu0 0
    %1471 = vmatpush1.bf16.msra.mxu0 0
    %1472 = vmatprep.subr.bf16.mxu0 0
    %1473 = vmatpush1.bf16.msra.mxu0 0
    %1474 = vmatprep.subr.bf16.mxu0 0
    %1475 = vmatpush1.bf16.msra.mxu0 0
    %1476 = vmatprep.subr.bf16.mxu0 0
    %1477 = vmatpush1.bf16.msra.mxu0 0
    %1478 = vmatprep.subr.bf16.mxu0 0
    %1479 = vmatpush1.bf16.msra.mxu0 0
    %1480 = vmatprep.subr.bf16.mxu0 0
    %1481 = vmatpush1.bf16.msra.mxu0 0
    %1482 = vmatprep.mubr.bf16.mxu0 0
    %1483 = vmatmul.mubr.bf16.gmra.mrb[0].mxu0 %v1060
    %v1484 = vpop.f32.mrb[0].mxu0
    %v1485 = vadd.f32 %v1130, %v1484
    %v1486 = vpop.f32.mrb[0].mxu0
    %v1487 = vadd.f32 %v1134, %v1486
    %v1488 = vpop.f32.mrb[0].mxu0
    %v1489 = vadd.f32 %v1130, %v1488
    %v1490 = vpop.f32.mrb[0].mxu0
    %v1491 = vadd.f32 %v1134, %v1490
    %1492 = vdwg.mxu0
    %1493 = vmatprep.subr.bf16.mxu0 %v1341
    %1494 = vmatpush1.bf16.msra.mxu0 %v1340
    %1495 = vmatprep.subr.bf16.mxu0 %v1348
    %1496 = vmatpush1.bf16.msra.mxu0 %v1347
    %1497 = vmatprep.subr.bf16.mxu0 %v1355
    %1498 = vmatpush1.bf16.msra.mxu0 %v1354
    %1499 = vmatprep.subr.bf16.mxu0 %v1362
    %1500 = vmatpush1.bf16.msra.mxu0 %v1361
    %1501 = vmatprep.subr.bf16.mxu0 %v1369
    %1502 = vmatpush1.bf16.msra.mxu0 %v1368
    %1503 = vmatprep.subr.bf16.mxu0 %v1376
    %1504 = vmatpush1.bf16.msra.mxu0 %v1375
    %1505 = vmatprep.subr.bf16.mxu0 %v1383
    %1506 = vmatpush1.bf16.msra.mxu0 %v1382
    %1507 = vmatprep.subr.bf16.mxu0 %v1390
    %1508 = vmatpush1.bf16.msra.mxu0 %v1389
    %1509 = vmatprep.subr.bf16.mxu0 0
    %1510 = vmatpush1.bf16.msra.mxu0 0
    %1511 = vmatprep.subr.bf16.mxu0 0
    %1512 = vmatpush1.bf16.msra.mxu0 0
    %1513 = vmatprep.subr.bf16.mxu0 0
    %1514 = vmatpush1.bf16.msra.mxu0 0
    %1515 = vmatprep.subr.bf16.mxu0 0
    %1516 = vmatpush1.bf16.msra.mxu0 0
    %1517 = vmatprep.subr.bf16.mxu0 0
    %1518 = vmatpush1.bf16.msra.mxu0 0
    %1519 = vmatprep.subr.bf16.mxu0 0
    %1520 = vmatpush1.bf16.msra.mxu0 0
    %1521 = vmatprep.subr.bf16.mxu0 0
    %1522 = vmatpush1.bf16.msra.mxu0 0
    %1523 = vmatprep.subr.bf16.mxu0 0
    %1524 = vmatpush1.bf16.msra.mxu0 0
    %1525 = vmatprep.mubr.bf16.mxu0 0
    %1526 = vmatmul.mubr.bf16.gmra.mrb[0].mxu0 %v1060
    %v1527 = vpop.f32.mrb[0].mxu0
    %v1528 = vadd.f32 %v1138, %v1527
    %v1529 = vpop.f32.mrb[0].mxu0
    %v1530 = vadd.f32 %v1142, %v1529
    %v1531 = vpop.f32.mrb[0].mxu0
    %v1532 = vadd.f32 %v1138, %v1531
    %v1533 = vpop.f32.mrb[0].mxu0
    %v1534 = vadd.f32 %v1142, %v1533
    %1535 = vdwg.mxu0
    %1536 = vmatprep.subr.bf16.mxu0 %v1343
    %1537 = vmatpush1.bf16.msra.mxu0 %v1342
    %1538 = vmatprep.subr.bf16.mxu0 %v1350
    %1539 = vmatpush1.bf16.msra.mxu0 %v1349
    %1540 = vmatprep.subr.bf16.mxu0 %v1357
    %1541 = vmatpush1.bf16.msra.mxu0 %v1356
    %1542 = vmatprep.subr.bf16.mxu0 %v1364
    %1543 = vmatpush1.bf16.msra.mxu0 %v1363
    %1544 = vmatprep.subr.bf16.mxu0 %v1371
    %1545 = vmatpush1.bf16.msra.mxu0 %v1370
    %1546 = vmatprep.subr.bf16.mxu0 %v1378
    %1547 = vmatpush1.bf16.msra.mxu0 %v1377
    %1548 = vmatprep.subr.bf16.mxu0 %v1385
    %1549 = vmatpush1.bf16.msra.mxu0 %v1384
    %1550 = vmatprep.subr.bf16.mxu0 %v1392
    %1551 = vmatpush1.bf16.msra.mxu0 %v1391
    %1552 = vmatprep.subr.bf16.mxu0 0
    %1553 = vmatpush1.bf16.msra.mxu0 0
    %1554 = vmatprep.subr.bf16.mxu0 0
    %1555 = vmatpush1.bf16.msra.mxu0 0
    %1556 = vmatprep.subr.bf16.mxu0 0
    %1557 = vmatpush1.bf16.msra.mxu0 0
    %1558 = vmatprep.subr.bf16.mxu0 0
    %1559 = vmatpush1.bf16.msra.mxu0 0
    %1560 = vmatprep.subr.bf16.mxu0 0
    %1561 = vmatpush1.bf16.msra.mxu0 0
    %1562 = vmatprep.subr.bf16.mxu0 0
    %1563 = vmatpush1.bf16.msra.mxu0 0
    %1564 = vmatprep.subr.bf16.mxu0 0
    %1565 = vmatpush1.bf16.msra.mxu0 0
    %1566 = vmatprep.subr.bf16.mxu0 0
    %1567 = vmatpush1.bf16.msra.mxu0 0
    %1568 = vmatprep.mubr.bf16.mxu0 0
    %1569 = vmatmul.mubr.bf16.gmra.mrb[0].mxu0 %v1060
    %v1570 = vpop.f32.mrb[0].mxu0
    %v1571 = vadd.f32 %v1146, %v1570
    %v1572 = vpop.f32.mrb[0].mxu0
    %v1573 = vadd.f32 %v1150, %v1572
    %v1574 = vpop.f32.mrb[0].mxu0
    %v1575 = vadd.f32 %v1146, %v1574
    %v1576 = vpop.f32.mrb[0].mxu0
    %v1577 = vadd.f32 %v1150, %v1576
    %1578 = vdwg.mxu0
    %1579 = vmatprep.subr.bf16.mxu0 0
    %1580 = vmatpush1.bf16.msra.mxu0 %v1344
    %1581 = vmatprep.subr.bf16.mxu0 0
    %1582 = vmatpush1.bf16.msra.mxu0 %v1351
    %1583 = vmatprep.subr.bf16.mxu0 0
    %1584 = vmatpush1.bf16.msra.mxu0 %v1358
    %1585 = vmatprep.subr.bf16.mxu0 0
    %1586 = vmatpush1.bf16.msra.mxu0 %v1365
    %1587 = vmatprep.subr.bf16.mxu0 0
    %1588 = vmatpush1.bf16.msra.mxu0 %v1372
    %1589 = vmatprep.subr.bf16.mxu0 0
    %1590 = vmatpush1.bf16.msra.mxu0 %v1379
    %1591 = vmatprep.subr.bf16.mxu0 0
    %1592 = vmatpush1.bf16.msra.mxu0 %v1386
    %1593 = vmatprep.subr.bf16.mxu0 0
    %1594 = vmatpush1.bf16.msra.mxu0 %v1393
    %1595 = vmatprep.subr.bf16.mxu0 0
    %1596 = vmatpush1.bf16.msra.mxu0 0
    %1597 = vmatprep.subr.bf16.mxu0 0
    %1598 = vmatpush1.bf16.msra.mxu0 0
    %1599 = vmatprep.subr.bf16.mxu0 0
    %1600 = vmatpush1.bf16.msra.mxu0 0
    %1601 = vmatprep.subr.bf16.mxu0 0
    %1602 = vmatpush1.bf16.msra.mxu0 0
    %1603 = vmatprep.subr.bf16.mxu0 0
    %1604 = vmatpush1.bf16.msra.mxu0 0
    %1605 = vmatprep.subr.bf16.mxu0 0
    %1606 = vmatpush1.bf16.msra.mxu0 0
    %1607 = vmatprep.subr.bf16.mxu0 0
    %1608 = vmatpush1.bf16.msra.mxu0 0
    %1609 = vmatprep.subr.bf16.mxu0 0
    %1610 = vmatpush1.bf16.msra.mxu0 0
    %1611 = vmatprep.mubr.bf16.mxu0 0
    %1612 = vmatmul.mubr.bf16.gmra.mrb[0].mxu0 %v1060
    %v1613 = vpop.f32.mrb[0].mxu0
    %v1614 = vadd.f32 %v1154, %v1613
    %v1615 = vpop.f32.mrb[0].mxu0
    %v1616 = vpop.f32.mrb[0].mxu0
    %v1617 = vadd.f32 %v1154, %v1616
    %v1618 = vpop.f32.mrb[0].mxu0
    %1619 = vdwg.mxu0
    %v1620 = vtanh.pop %v1485
    %v1621 = vtanh.pop %v1487
    %v1622 = vtanh.pop %v1528
    %v1623 = vtanh.pop %v1530
    %v1624 = vtanh.pop %v1571
    %v1625 = vtanh.pop %v1573
    %v1626 = vtanh.pop %v1614
    %v1627 = vtanh.pop %v1489
    %v1628 = vtanh.pop %v1491
    %v1629 = vtanh.pop %v1532
    %v1630 = vtanh.pop %v1534
    %v1631 = vtanh.pop %v1575
    %v1632 = vtanh.pop %v1577
    %v1633 = vtanh.pop %v1617
    %1634 = vst [vmem:[#allocation2] sm:$0xff] %v1620
    %1635 = vst [vmem:[#allocation2 + $0x8] sm:$0xff] %v1621
    %1636 = vst [vmem:[#allocation2 + $0x10] sm:$0xff] %v1622
    %1637 = vst [vmem:[#allocation2 + $0x18] sm:$0xff] %v1623
    %1638 = vst [vmem:[#allocation2 + $0x20] sm:$0xff] %v1624
    %1639 = vst [vmem:[#allocation2 + $0x28] sm:$0xff] %v1625
    %1640 = vst.msk [vmem:[#allocation2 + $0x30] sm:$0xff] %vm472, %v1626
    %1641 = vst [vmem:[#allocation2 + $0x38] sm:$0xff] %v1627
    %1642 = vst [vmem:[#allocation2 + $0x40] sm:$0xff] %v1628
    %1643 = vst [vmem:[#allocation2 + $0x48] sm:$0xff] %v1629
    %1644 = vst [vmem:[#allocation2 + $0x50] sm:$0xff] %v1630
    %1645 = vst [vmem:[#allocation2 + $0x58] sm:$0xff] %v1631
    %1646 = vst [vmem:[#allocation2 + $0x60] sm:$0xff] %v1632
    %1647 = vst.msk [vmem:[#allocation2 + $0x68] sm:$0xff] %vm472, %v1633
    // Predicated region
    $region62: #{autoencoder_forward.1} parent=1 // pred_check
      _
    $region63: #{autoencoder_forward.1} parent=1 // pred_check_branch
      %1649 = sbr.rel (0) target = $region65
    $region64: #{autoencoder_forward.1} parent=1 // pred_region
      %s1651 = ssub.s32 1792, 1792
      %1652 = vsyncadd [#allocation3], %s1651
      %s1653 = sshll.u32 [#allocation2], 4
      %s1654 = int_to_ptr.vmem [resolvable:$true] %s1653
      %1659 = dma.vmem_to_hbm [thread:$0]  %s1654, 1792, %s15, [#allocation3], 896, 896, 56
    $region65: #{autoencoder_forward.1} parent=1 // pred_fallthru
      _
    // Predicated region
    $region66: #{autoencoder_forward.1} parent=1 // pred_check
      _
    $region67: #{autoencoder_forward.1} parent=1 // pred_check_branch
      %1661 = sbr.rel (0) target = $region69
    $region68: #{autoencoder_forward.1} parent=1 // pred_region
      %1662 = dma.done [#allocation3], 1792
    $region69: #{autoencoder_forward.1} parent=1 // pred_fallthru
      _
    %1663 = vsyncpa [#allocation3], 1

</llo_original>
